<compile_context>
chip_gen: v7x
topology: tpu7x:2x2x1
jax: 0.10.0
libtpu: 0.0.40
codegen_flags: <defaults>
</compile_context>

<pallas_src>
import jax
import jax.numpy as jnp
from jax.experimental import pallas as pl
from jax.experimental.pallas import tpu as pltpu

# ---- model sizes (small, consistent with DIORA.forward) --------------------
B = 2            # batch
S = 8            # sequence length
INPUT = 32       # DIORA input_size (dim of h fed to leaf_transform)
SIZE = 32        # DIORA hidden size
ROW_BLOCK = 128  # rows per grid step (multiple of 128: good on v5e and v6e/v7x)
USE_BF16_MXU = False  # cast MXU operands to bf16 (f32 accumulate) on v6e/v7x


def _mxu(x):
    return x.astype(jnp.bfloat16) if USE_BF16_MXU else x


# =============================== kernels =====================================

def leaf_kernel(x_ref, v_ref, b_ref, out_ref):
    """UnitNorm(tanh(x @ V + B)) for one ROW_BLOCK of leaves."""
    x = x_ref[...]
    y = jnp.tanh(
        jnp.dot(_mxu(x), _mxu(v_ref[...]), preferred_element_type=jnp.float32)
        + b_ref[...])
    nrm = jnp.sqrt(jnp.sum(y * y, axis=-1, keepdims=True))
    out_ref[...] = (y / jnp.maximum(nrm, 1e-8)).astype(out_ref.dtype)


def cell_kernel(lh_ref, rh_ref, ls_ref, rs_ref,
                w0l_ref, w0r_ref, b0_ref, w1_ref, b1_ref, mat_ref,
                h_out_ref, s_out_ref):
    """ComposeMLP + Bilinear score for one ROW_BLOCK of (span, split) pairs.

    relu([lh, rh] @ W0 + B0) is computed as relu(lh@W0l + rh@W0r + B0): the
    concat is folded into two natural (M,K)x(K,N) matmuls (bit-identical).
    """
    lh = lh_ref[...]
    rh = rh_ref[...]
    z0 = (jnp.dot(_mxu(lh), _mxu(w0l_ref[...]), preferred_element_type=jnp.float32)
          + jnp.dot(_mxu(rh), _mxu(w0r_ref[...]), preferred_element_type=jnp.float32)
          + b0_ref[...])
    h0 = jnp.maximum(z0, 0.0)
    z1 = (jnp.dot(_mxu(h0), _mxu(w1_ref[...]), preferred_element_type=jnp.float32)
          + b1_ref[...])
    h_out_ref[...] = jnp.maximum(z1, 0.0).astype(h_out_ref.dtype)

    # Bilinear(lh, rh): row-wise dot of (lh @ mat) with rh.
    z = jnp.dot(_mxu(lh), _mxu(mat_ref[...]), preferred_element_type=jnp.float32)
    xs = jnp.sum(z * rh, axis=-1, keepdims=True)
    s_out_ref[...] = (xs + ls_ref[...] + rs_ref[...]).astype(s_out_ref.dtype)


# ============================ pallas_call wrappers ===========================

def _compiler_params():
    return pltpu.CompilerParams(
        dimension_semantics=("parallel",),      # row-blocks are independent
        vmem_limit_bytes=32 * 1024 * 1024)      # fits v7x's 64 MiB with headroom


def _row_spec(cols):
    return pl.BlockSpec((ROW_BLOCK, cols), lambda i: (i, 0))


def _full_spec(rows, cols):
    return pl.BlockSpec((rows, cols), lambda i: (0, 0))


def _pad_rows(a, m_pad):
    pad = m_pad - a.shape[0]
    if pad == 0:
        return a
    return jnp.pad(a, ((0, pad), (0, 0)))


def leaf_call(x, v, b2d):
    m = x.shape[0]
    m_pad = pl.cdiv(m, ROW_BLOCK) * ROW_BLOCK
    cost = pl.CostEstimate(
        flops=2 * m_pad * INPUT * SIZE,
        transcendentals=m_pad * SIZE,
        bytes_accessed=4 * (m_pad * INPUT + INPUT * SIZE + SIZE + m_pad * SIZE))
    out = pl.pallas_call(
        leaf_kernel,
        grid=(m_pad // ROW_BLOCK,),
        in_specs=[_row_spec(INPUT), _full_spec(INPUT, SIZE), _full_spec(1, SIZE)],
        out_specs=_row_spec(SIZE),
        out_shape=jax.ShapeDtypeStruct((m_pad, SIZE), jnp.float32),
        compiler_params=_compiler_params(),
        cost_estimate=cost,
    )(_pad_rows(x, m_pad), v, b2d)
    return out[:m]


def cell_call(lh, rh, ls, rs, w0l, w0r, b0, w1, b1, mat):
    m = lh.shape[0]
    m_pad = pl.cdiv(m, ROW_BLOCK) * ROW_BLOCK
    cost = pl.CostEstimate(
        flops=8 * m_pad * SIZE * SIZE,
        transcendentals=0,
        bytes_accessed=4 * (2 * m_pad * SIZE + 2 * m_pad
                            + 4 * SIZE * SIZE + 2 * SIZE
                            + m_pad * SIZE + m_pad))
    h_out, s_out = pl.pallas_call(
        cell_kernel,
        grid=(m_pad // ROW_BLOCK,),
        in_specs=[_row_spec(SIZE), _row_spec(SIZE), _row_spec(1), _row_spec(1),
                  _full_spec(SIZE, SIZE), _full_spec(SIZE, SIZE),
                  _full_spec(1, SIZE), _full_spec(SIZE, SIZE),
                  _full_spec(1, SIZE), _full_spec(SIZE, SIZE)],
        out_specs=(_row_spec(SIZE), _row_spec(1)),
        out_shape=(jax.ShapeDtypeStruct((m_pad, SIZE), jnp.float32),
                   jax.ShapeDtypeStruct((m_pad, 1), jnp.float32)),
        compiler_params=_compiler_params(),
        cost_estimate=cost,
    )(_pad_rows(lh, m_pad), _pad_rows(rh, m_pad),
      _pad_rows(ls, m_pad), _pad_rows(rs, m_pad),
      w0l, w0r, b0, w1, b1, mat)
    return h_out[:m], s_out[:m]


# ====================== chart index tables (static Python) ===================

def offset_lookup(length):
    offs, total = [], 0
    for lvl in range(length):
        offs.append(total)
        total += length - lvl
    return offs


def inside_components(length, level):
    offs = offset_lookup(length)
    L, N = length - level, level
    l_idx, r_idx = [], []
    for pos in range(L):
        for k in range(N):
            l_idx.append(offs[k] + pos)
            r_idx.append(offs[level - k - 1] + pos + k + 1)
    return l_idx, r_idx


def outside_components(length, level):
    offs = offset_lookup(length)
    L, N = length - level, length - level - 1
    p_idx, s_idx = [], []
    for pos in range(L):
        for x in range(pos):                      # parent extends to the left
            p_idx.append(offs[pos + level - x] + x)
            s_idx.append(offs[pos - 1 - x] + x)
        for y in range(pos + level + 1, length):  # parent extends to the right
            p_idx.append(offs[y - pos] + pos)
            s_idx.append(offs[y - pos - level - 1] + pos + level + 1)
    assert len(p_idx) == L * N
    return p_idx, s_idx


def unit_norm(x):
    nrm = jnp.sqrt(jnp.sum(x * x, axis=-1, keepdims=True))
    return x / jnp.maximum(nrm, 1e-8)


# ================================ forward ====================================

def diora_forward(h_in, params):
    bsz, length, _ = h_in.shape
    offs = offset_lookup(length)
    ncells = offs[-1] + 1

    b0_in = params["in_B0"].reshape(1, SIZE)
    b1_in = params["in_B1"].reshape(1, SIZE)
    b0_out = params["out_B0"].reshape(1, SIZE)
    b1_out = params["out_B1"].reshape(1, SIZE)
    w0l_in, w0r_in = params["in_W0"][:SIZE], params["in_W0"][SIZE:]
    w0l_out, w0r_out = params["out_W0"][:SIZE], params["out_W0"][SIZE:]
    mat = params["score_mat"]

    # 1. leaf transform -------------------------------------------------------
    leaves = leaf_call(h_in.reshape(bsz * length, INPUT), params["in_V"], b0_in)
    leaves = leaves.reshape(bsz, length, SIZE)

    # 2. build chart (the torch chart carries a singleton k dim; dropped here) -
    inside_h = jnp.zeros((bsz, ncells, SIZE), jnp.float32).at[:, :length, :].set(leaves)
    inside_s = jnp.zeros((bsz, ncells, 1), jnp.float32)
    outside_h = jnp.zeros((bsz, ncells, SIZE), jnp.float32).at[:, ncells - 1, :].set(
        jnp.broadcast_to(params["root_h"][None, :], (bsz, SIZE)))
    outside_s = jnp.zeros((bsz, ncells, 1), jnp.float32)

    # 3. inside pass ----------------------------------------------------------
    for level in range(1, length):
        L, N = length - level, level
        l_idx, r_idx = inside_components(length, level)
        l_idx = jnp.asarray(l_idx, jnp.int32)
        r_idx = jnp.asarray(r_idx, jnp.int32)
        m = bsz * L * N
        lh = jnp.take(inside_h, l_idx, axis=1).reshape(m, SIZE)
        rh = jnp.take(inside_h, r_idx, axis=1).reshape(m, SIZE)
        ls = jnp.take(inside_s, l_idx, axis=1).reshape(m, 1)
        rs = jnp.take(inside_s, r_idx, axis=1).reshape(m, 1)
        h_pairs, s_pairs = cell_call(lh, rh, ls, rs, w0l_in, w0r_in, b0_in,
                                     params["in_W1"], b1_in, mat)
        hbar = unit_norm(h_pairs.reshape(bsz, L, N, SIZE).sum(axis=2))
        sbar = s_pairs.reshape(bsz, L, N, 1).sum(axis=2)
        off = offs[level]
        inside_h = inside_h.at[:, off:off + L, :].set(hbar)
        inside_s = inside_s.at[:, off:off + L, :].set(sbar)

    # 4. outside pass ---------------------------------------------------------
    for level in range(length - 2, -1, -1):
        L, N = length - level, length - level - 1
        p_idx, s_idx = outside_components(length, level)
        p_idx = jnp.asarray(p_idx, jnp.int32)
        s_idx = jnp.asarray(s_idx, jnp.int32)
        m = bsz * L * N
        ph = jnp.take(outside_h, p_idx, axis=1).reshape(m, SIZE)
        sh = jnp.take(outside_h, s_idx, axis=1).reshape(m, SIZE)
        ps = jnp.take(outside_s, p_idx, axis=1).reshape(m, 1)
        ss = jnp.take(outside_s, s_idx, axis=1).reshape(m, 1)
        h_pairs, s_pairs = cell_call(ph, sh, ps, ss, w0l_out, w0r_out, b0_out,
                                     params["out_W1"], b1_out, mat)
        hbar = unit_norm(h_pairs.reshape(bsz, L, N, SIZE).sum(axis=2))
        sbar = s_pairs.reshape(bsz, L, N, 1).sum(axis=2)
        off = offs[level]
        outside_h = outside_h.at[:, off:off + L, :].set(hbar)
        outside_s = outside_s.at[:, off:off + L, :].set(sbar)

    return {"inside_h": inside_h, "inside_s": inside_s,
            "outside_h": outside_h, "outside_s": outside_s}


# ============================ pure-JAX reference =============================

def reference_forward(h_in, params):
    P = jax.lax.Precision.HIGHEST

    def mm(a, b):
        return jnp.matmul(a, b, precision=P)

    def compose(h0, h1, w0, b0, w1, b1):
        h = jnp.maximum(mm(jnp.concatenate([h0, h1], axis=-1), w0) + b0, 0.0)
        return jnp.maximum(mm(h, w1) + b1, 0.0)

    def bilinear(h0, h1, mat):
        return jnp.sum(mm(h0, mat) * h1, axis=-1, keepdims=True)

    bsz, length, _ = h_in.shape
    offs = offset_lookup(length)
    ncells = offs[-1] + 1

    leaves = unit_norm(jnp.tanh(mm(h_in, params["in_V"]) + params["in_B0"]))

    inside_h = jnp.zeros((bsz, ncells, SIZE), jnp.float32).at[:, :length, :].set(leaves)
    inside_s = jnp.zeros((bsz, ncells, 1), jnp.float32)
    outside_h = jnp.zeros((bsz, ncells, SIZE), jnp.float32).at[:, ncells - 1, :].set(
        jnp.broadcast_to(params["root_h"][None, :], (bsz, SIZE)))
    outside_s = jnp.zeros((bsz, ncells, 1), jnp.float32)

    for level in range(1, length):
        L, N = length - level, level
        l_idx, r_idx = inside_components(length, level)
        l_idx = jnp.asarray(l_idx, jnp.int32)
        r_idx = jnp.asarray(r_idx, jnp.int32)
        lh = jnp.take(inside_h, l_idx, axis=1)
        rh = jnp.take(inside_h, r_idx, axis=1)
        ls = jnp.take(inside_s, l_idx, axis=1)
        rs = jnp.take(inside_s, r_idx, axis=1)
        h = compose(lh, rh, params["in_W0"], params["in_B0"],
                    params["in_W1"], params["in_B1"]).reshape(bsz, L, N, SIZE)
        hbar = unit_norm(h.sum(axis=2))
        xs = bilinear(lh, rh, params["score_mat"])
        sbar = (xs + ls + rs).reshape(bsz, L, N, 1).sum(axis=2)
        off = offs[level]
        inside_h = inside_h.at[:, off:off + L, :].set(hbar)
        inside_s = inside_s.at[:, off:off + L, :].set(sbar)

    for level in range(length - 2, -1, -1):
        L, N = length - level, length - level - 1
        p_idx, s_idx = outside_components(length, level)
        p_idx = jnp.asarray(p_idx, jnp.int32)
        s_idx = jnp.asarray(s_idx, jnp.int32)
        ph = jnp.take(outside_h, p_idx, axis=1)
        sh = jnp.take(outside_h, s_idx, axis=1)
        ps = jnp.take(outside_s, p_idx, axis=1)
        ss = jnp.take(outside_s, s_idx, axis=1)
        h = compose(ph, sh, params["out_W0"], params["out_B0"],
                    params["out_W1"], params["out_B1"]).reshape(bsz, L, N, SIZE)
        hbar = unit_norm(h.sum(axis=2))
        xs = bilinear(ph, sh, params["score_mat"])
        sbar = (xs + ps + ss).reshape(bsz, L, N, 1).sum(axis=2)
        off = offs[level]
        outside_h = outside_h.at[:, off:off + L, :].set(hbar)
        outside_s = outside_s.at[:, off:off + L, :].set(sbar)

    return {"inside_h": inside_h, "inside_s": inside_s,
            "outside_h": outside_h, "outside_s": outside_s}


# ================================= params ====================================

def init_params(key):
    ks = jax.random.split(key, 11)
    nrm = lambda k, shp: jax.random.normal(k, shp, jnp.float32)
    return {
        "in_V":   nrm(ks[0], (INPUT, SIZE)),
        "in_W0":  nrm(ks[1], (2 * SIZE, SIZE)),
        "in_B0":  nrm(ks[2], (SIZE,)),
        "in_W1":  nrm(ks[3], (SIZE, SIZE)),
        "in_B1":  nrm(ks[4], (SIZE,)),
        "out_W0": nrm(ks[5], (2 * SIZE, SIZE)),
        "out_B0": nrm(ks[6], (SIZE,)),
        "out_W1": nrm(ks[7], (SIZE, SIZE)),
        "out_B1": nrm(ks[8], (SIZE,)),
        # outside_score.mat -- the Bilinear used for xs in BOTH passes, exactly
        # as in the reference code (inside_score is unused in forward()).
        "score_mat": nrm(ks[9], (SIZE, SIZE)),
        "root_h":    nrm(ks[10], (SIZE,)),
    }


if __name__ == "__main__":
    key = jax.random.PRNGKey(0)
    k_h, k_p = jax.random.split(key)
    h_in = jax.random.normal(k_h, (B, S, INPUT), jnp.float32)
    params = init_params(k_p)

    fwd = jax.jit(diora_forward)
    out = jax.block_until_ready(fwd(h_in, params))

    ref = reference_forward(h_in, params)
    for name in ("inside_h", "inside_s", "outside_h", "outside_s"):
        a, b = out[name], ref[name]
        assert a.shape == b.shape, (name, a.shape, b.shape)
        assert bool(jnp.allclose(a, b, rtol=1e-3, atol=1e-3)), (
            name, float(jnp.max(jnp.abs(a - b))))

    print("KERNEL_OK")
</pallas_src>

<mosaic_0001>
module attributes {stable_mosaic.version = 11 : i64} {
  func.func @leaf_kernel(%arg0: i32, %arg1: memref<128x32xf32, #tpu.memory_space<vmem>>, %arg2: memref<32x32xf32, #tpu.memory_space<vmem>>, %arg3: memref<1x32xf32, #tpu.memory_space<vmem>>, %arg4: memref<128x32xf32, #tpu.memory_space<vmem>>) attributes {dimension_semantics = [#tpu.dimension_semantics<parallel>], iteration_bounds = array<i64: 1>, scalar_prefetch = 0 : i64, scratch_operands = 0 : i64, tpu.core_type = #tpu.core_type<tc>, window_params = [{transform_indices = @transform_0, window_bounds = array<i64: 128, 32>}, {pipeline_mode = #tpu.pipeline_mode<synchronous>, transform_indices = @transform_1, window_bounds = array<i64: 32, 32>}, {pipeline_mode = #tpu.pipeline_mode<synchronous>, transform_indices = @transform_2, window_bounds = array<i64: 1, 32>}, {transform_indices = @transform_3, window_bounds = array<i64: 128, 32>}]} {
    %c0 = arith.constant 0 : index
    %c0_0 = arith.constant 0 : index
    %0 = vector.load %arg1[%c0, %c0_0] : memref<128x32xf32, #tpu.memory_space<vmem>>, vector<128x32xf32>
    %c0_1 = arith.constant 0 : index
    %c0_2 = arith.constant 0 : index
    %1 = vector.load %arg2[%c0_1, %c0_2] : memref<32x32xf32, #tpu.memory_space<vmem>>, vector<32x32xf32>
    %cst = arith.constant dense<0.000000e+00> : vector<128x32xf32>
    %2 = tpu.matmul %0, %1, %cst {dimension_numbers = #tpu.dot_dimension_numbers<[1], [0], [0], [1], [0, 0, 1, 1], [], []>} : vector<128x32xf32>, vector<32x32xf32>, vector<128x32xf32> -> vector<128x32xf32>
    %c0_3 = arith.constant 0 : index
    %c0_4 = arith.constant 0 : index
    %3 = vector.load %arg3[%c0_3, %c0_4] : memref<1x32xf32, #tpu.memory_space<vmem>>, vector<1x32xf32>
    %4 = vector.broadcast %3 : vector<1x32xf32> to vector<128x32xf32>
    %5 = arith.addf %2, %4 : vector<128x32xf32>
    %6 = math.tanh %5 : vector<128x32xf32>
    %7 = arith.mulf %6, %6 : vector<128x32xf32>
    %cst_5 = arith.constant dense<0.000000e+00> : vector<128xf32>
    %8 = vector.multi_reduction <add>, %7, %cst_5 [1] : vector<128x32xf32> to vector<128xf32>
    %9 = vector.shape_cast %8 : vector<128xf32> to vector<128x1xf32>
    %10 = math.sqrt %9 : vector<128x1xf32>
    %cst_6 = arith.constant 9.99999993E-9 : f32
    %11 = vector.broadcast %cst_6 : f32 to vector<128x1xf32>
    %12 = arith.maximumf %10, %11 : vector<128x1xf32>
    %13 = vector.broadcast %12 : vector<128x1xf32> to vector<128x32xf32>
    %14 = arith.divf %6, %13 : vector<128x32xf32>
    %c0_7 = arith.constant 0 : index
    %c0_8 = arith.constant 0 : index
    %15 = vector.load %arg4[%c0_7, %c0_8] : memref<128x32xf32, #tpu.memory_space<vmem>>, vector<128x32xf32>
    tpu.vector_store %arg4[%c0_7, %c0_8], %14 {strides = array<i32>} : memref<128x32xf32, #tpu.memory_space<vmem>>, vector<128x32xf32>,
    return
  }
  func.func @transform_0(%arg0: i32) -> (i32, i32) {
    %c0_i32 = arith.constant 0 : i32
    %c0_i32_0 = arith.constant 0 : i32
    return %arg0, %c0_i32 : i32, i32
  }
  func.func @transform_1(%arg0: i32) -> (i32, i32) {
    %c0_i32 = arith.constant 0 : i32
    %c0_i32_0 = arith.constant 0 : i32
    %c0_i32_1 = arith.constant 0 : i32
    return %c0_i32, %c0_i32_0 : i32, i32
  }
  func.func @transform_2(%arg0: i32) -> (i32, i32) {
    %c0_i32 = arith.constant 0 : i32
    %c0_i32_0 = arith.constant 0 : i32
    %c0_i32_1 = arith.constant 0 : i32
    return %c0_i32, %c0_i32_0 : i32, i32
  }
  func.func @transform_3(%arg0: i32) -> (i32, i32) {
    %c0_i32 = arith.constant 0 : i32
    %c0_i32_0 = arith.constant 0 : i32
    return %arg0, %c0_i32 : i32, i32
  }
}

module attributes {stable_mosaic.version = 11 : i64} {
  func.func @cell_kernel(%arg0: i32, %arg1: memref<128x32xf32, #tpu.memory_space<vmem>>, %arg2: memref<128x32xf32, #tpu.memory_space<vmem>>, %arg3: memref<128x1xf32, #tpu.memory_space<vmem>>, %arg4: memref<128x1xf32, #tpu.memory_space<vmem>>, %arg5: memref<32x32xf32, #tpu.memory_space<vmem>>, %arg6: memref<32x32xf32, #tpu.memory_space<vmem>>, %arg7: memref<1x32xf32, #tpu.memory_space<vmem>>, %arg8: memref<32x32xf32, #tpu.memory_space<vmem>>, %arg9: memref<1x32xf32, #tpu.memory_space<vmem>>, %arg10: memref<32x32xf32, #tpu.memory_space<vmem>>, %arg11: memref<128x32xf32, #tpu.memory_space<vmem>>, %arg12: memref<128x1xf32, #tpu.memory_space<vmem>>) attributes {dimension_semantics = [#tpu.dimension_semantics<parallel>], iteration_bounds = array<i64: 1>, scalar_prefetch = 0 : i64, scratch_operands = 0 : i64, tpu.core_type = #tpu.core_type<tc>, window_params = [{transform_indices = @transform_0, window_bounds = array<i64: 128, 32>}, {transform_indices = @transform_1, window_bounds = array<i64: 128, 32>}, {transform_indices = @transform_2, window_bounds = array<i64: 128, 1>}, {transform_indices = @transform_3, window_bounds = array<i64: 128, 1>}, {pipeline_mode = #tpu.pipeline_mode<synchronous>, transform_indices = @transform_4, window_bounds = array<i64: 32, 32>}, {pipeline_mode = #tpu.pipeline_mode<synchronous>, transform_indices = @transform_5, window_bounds = array<i64: 32, 32>}, {pipeline_mode = #tpu.pipeline_mode<synchronous>, transform_indices = @transform_6, window_bounds = array<i64: 1, 32>}, {pipeline_mode = #tpu.pipeline_mode<synchronous>, transform_indices = @transform_7, window_bounds = array<i64: 32, 32>}, {pipeline_mode = #tpu.pipeline_mode<synchronous>, transform_indices = @transform_8, window_bounds = array<i64: 1, 32>}, {pipeline_mode = #tpu.pipeline_mode<synchronous>, transform_indices = @transform_9, window_bounds = array<i64: 32, 32>}, {transform_indices = @transform_10, window_bounds = array<i64: 128, 32>}, {transform_indices = @transform_11, window_bounds = array<i64: 128, 1>}]} {
    %c0 = arith.constant 0 : index
    %c0_0 = arith.constant 0 : index
    %0 = vector.load %arg1[%c0, %c0_0] : memref<128x32xf32, #tpu.memory_space<vmem>>, vector<128x32xf32>
    %c0_1 = arith.constant 0 : index
    %c0_2 = arith.constant 0 : index
    %1 = vector.load %arg2[%c0_1, %c0_2] : memref<128x32xf32, #tpu.memory_space<vmem>>, vector<128x32xf32>
    %c0_3 = arith.constant 0 : index
    %c0_4 = arith.constant 0 : index
    %2 = vector.load %arg5[%c0_3, %c0_4] : memref<32x32xf32, #tpu.memory_space<vmem>>, vector<32x32xf32>
    %cst = arith.constant dense<0.000000e+00> : vector<128x32xf32>
    %3 = tpu.matmul %0, %2, %cst {dimension_numbers = #tpu.dot_dimension_numbers<[1], [0], [0], [1], [0, 0, 1, 1], [], []>} : vector<128x32xf32>, vector<32x32xf32>, vector<128x32xf32> -> vector<128x32xf32>
    %c0_5 = arith.constant 0 : index
    %c0_6 = arith.constant 0 : index
    %4 = vector.load %arg6[%c0_5, %c0_6] : memref<32x32xf32, #tpu.memory_space<vmem>>, vector<32x32xf32>
    %cst_7 = arith.constant dense<0.000000e+00> : vector<128x32xf32>
    %5 = tpu.matmul %1, %4, %cst_7 {dimension_numbers = #tpu.dot_dimension_numbers<[1], [0], [0], [1], [0, 0, 1, 1], [], []>} : vector<128x32xf32>, vector<32x32xf32>, vector<128x32xf32> -> vector<128x32xf32>
    %6 = arith.addf %3, %5 : vector<128x32xf32>
    %c0_8 = arith.constant 0 : index
    %c0_9 = arith.constant 0 : index
    %7 = vector.load %arg7[%c0_8, %c0_9] : memref<1x32xf32, #tpu.memory_space<vmem>>, vector<1x32xf32>
    %8 = vector.broadcast %7 : vector<1x32xf32> to vector<128x32xf32>
    %9 = arith.addf %6, %8 : vector<128x32xf32>
    %cst_10 = arith.constant 0.000000e+00 : f32
    %10 = vector.broadcast %cst_10 : f32 to vector<128x32xf32>
    %11 = arith.maximumf %9, %10 : vector<128x32xf32>
    %c0_11 = arith.constant 0 : index
    %c0_12 = arith.constant 0 : index
    %12 = vector.load %arg8[%c0_11, %c0_12] : memref<32x32xf32, #tpu.memory_space<vmem>>, vector<32x32xf32>
    %cst_13 = arith.constant dense<0.000000e+00> : vector<128x32xf32>
    %13 = tpu.matmul %11, %12, %cst_13 {dimension_numbers = #tpu.dot_dimension_numbers<[1], [0], [0], [1], [0, 0, 1, 1], [], []>} : vector<128x32xf32>, vector<32x32xf32>, vector<128x32xf32> -> vector<128x32xf32>
    %c0_14 = arith.constant 0 : index
    %c0_15 = arith.constant 0 : index
    %14 = vector.load %arg9[%c0_14, %c0_15] : memref<1x32xf32, #tpu.memory_space<vmem>>, vector<1x32xf32>
    %15 = vector.broadcast %14 : vector<1x32xf32> to vector<128x32xf32>
    %16 = arith.addf %13, %15 : vector<128x32xf32>
    %cst_16 = arith.constant 0.000000e+00 : f32
    %17 = vector.broadcast %cst_16 : f32 to vector<128x32xf32>
    %18 = arith.maximumf %16, %17 : vector<128x32xf32>
    %c0_17 = arith.constant 0 : index
    %c0_18 = arith.constant 0 : index
    %19 = vector.load %arg11[%c0_17, %c0_18] : memref<128x32xf32, #tpu.memory_space<vmem>>, vector<128x32xf32>
    tpu.vector_store %arg11[%c0_17, %c0_18], %18 {strides = array<i32>} : memref<128x32xf32, #tpu.memory_space<vmem>>, vector<128x32xf32>,
    %c0_19 = arith.constant 0 : index
    %c0_20 = arith.constant 0 : index
    %20 = vector.load %arg10[%c0_19, %c0_20] : memref<32x32xf32, #tpu.memory_space<vmem>>, vector<32x32xf32>
    %cst_21 = arith.constant dense<0.000000e+00> : vector<128x32xf32>
    %21 = tpu.matmul %0, %20, %cst_21 {dimension_numbers = #tpu.dot_dimension_numbers<[1], [0], [0], [1], [0, 0, 1, 1], [], []>} : vector<128x32xf32>, vector<32x32xf32>, vector<128x32xf32> -> vector<128x32xf32>
    %22 = arith.mulf %21, %1 : vector<128x32xf32>
    %cst_22 = arith.constant dense<0.000000e+00> : vector<128xf32>
    %23 = vector.multi_reduction <add>, %22, %cst_22 [1] : vector<128x32xf32> to vector<128xf32>
    %24 = vector.shape_cast %23 : vector<128xf32> to vector<128x1xf32>
    %c0_23 = arith.constant 0 : index
    %c0_24 = arith.constant 0 : index
    %25 = vector.load %arg3[%c0_23, %c0_24] : memref<128x1xf32, #tpu.memory_space<vmem>>, vector<128x1xf32>
    %26 = arith.addf %24, %25 : vector<128x1xf32>
    %c0_25 = arith.constant 0 : index
    %c0_26 = arith.constant 0 : index
    %27 = vector.load %arg4[%c0_25, %c0_26] : memref<128x1xf32, #tpu.memory_space<vmem>>, vector<128x1xf32>
    %28 = arith.addf %26, %27 : vector<128x1xf32>
    %c0_27 = arith.constant 0 : index
    %c0_28 = arith.constant 0 : index
    %29 = vector.load %arg12[%c0_27, %c0_28] : memref<128x1xf32, #tpu.memory_space<vmem>>, vector<128x1xf32>
    tpu.vector_store %arg12[%c0_27, %c0_28], %28 {strides = array<i32>} : memref<128x1xf32, #tpu.memory_space<vmem>>, vector<128x1xf32>,
    return
  }
  func.func @transform_0(%arg0: i32) -> (i32, i32) {
    %c0_i32 = arith.constant 0 : i32
    %c0_i32_0 = arith.constant 0 : i32
    return %arg0, %c0_i32 : i32, i32
  }
  func.func @transform_1(%arg0: i32) -> (i32, i32) {
    %c0_i32 = arith.constant 0 : i32
    %c0_i32_0 = arith.constant 0 : i32
    return %arg0, %c0_i32 : i32, i32
  }
  func.func @transform_2(%arg0: i32) -> (i32, i32) {
    %c0_i32 = arith.constant 0 : i32
    %c0_i32_0 = arith.constant 0 : i32
    return %arg0, %c0_i32 : i32, i32
  }
  func.func @transform_3(%arg0: i32) -> (i32, i32) {
    %c0_i32 = arith.constant 0 : i32
    %c0_i32_0 = arith.constant 0 : i32
    return %arg0, %c0_i32 : i32, i32
  }
  func.func @transform_4(%arg0: i32) -> (i32, i32) {
    %c0_i32 = arith.constant 0 : i32
    %c0_i32_0 = arith.constant 0 : i32
    %c0_i32_1 = arith.constant 0 : i32
    return %c0_i32, %c0_i32_0 : i32, i32
  }
  func.func @transform_5(%arg0: i32) -> (i32, i32) {
    %c0_i32 = arith.constant 0 : i32
    %c0_i32_0 = arith.constant 0 : i32
    %c0_i32_1 = arith.constant 0 : i32
    return %c0_i32, %c0_i32_0 : i32, i32
  }
  func.func @transform_6(%arg0: i32) -> (i32, i32) {
    %c0_i32 = arith.constant 0 : i32
    %c0_i32_0 = arith.constant 0 : i32
    %c0_i32_1 = arith.constant 0 : i32
    return %c0_i32, %c0_i32_0 : i32, i32
  }
  func.func @transform_7(%arg0: i32) -> (i32, i32) {
    %c0_i32 = arith.constant 0 : i32
    %c0_i32_0 = arith.constant 0 : i32
    %c0_i32_1 = arith.constant 0 : i32
    return %c0_i32, %c0_i32_0 : i32, i32
  }
  func.func @transform_8(%arg0: i32) -> (i32, i32) {
    %c0_i32 = arith.constant 0 : i32
    %c0_i32_0 = arith.constant 0 : i32
    %c0_i32_1 = arith.constant 0 : i32
    return %c0_i32, %c0_i32_0 : i32, i32
  }
  func.func @transform_9(%arg0: i32) -> (i32, i32) {
    %c0_i32 = arith.constant 0 : i32
    %c0_i32_0 = arith.constant 0 : i32
    %c0_i32_1 = arith.constant 0 : i32
    return %c0_i32, %c0_i32_0 : i32, i32
  }
  func.func @transform_10(%arg0: i32) -> (i32, i32) {
    %c0_i32 = arith.constant 0 : i32
    %c0_i32_0 = arith.constant 0 : i32
    return %arg0, %c0_i32 : i32, i32
  }
  func.func @transform_11(%arg0: i32) -> (i32, i32) {
    %c0_i32 = arith.constant 0 : i32
    %c0_i32_0 = arith.constant 0 : i32
    return %arg0, %c0_i32 : i32, i32
  }
}

</mosaic_0001>

<llo_original>
// kernel: diora_forward.15
$region0: #{diora_forward.15}
  #allocation0 [shape = 'u32[]', space=smem, size = 0x4, offset = 0x4, fixed_abs, tag = 'smem constant byte address 0x4 - core index']
  #allocation1 [shape = 'u32[144,128]{1,0:T(1,128)}', space=vmem, size = 0x12000, scoped, tag = 'internal scratch']
  %s0 = inlined_call_operand.vmem [shape: f32[128,32], index: 0, kind: input, shape index: {}]
  %s1 = inlined_call_operand.vmem [shape: f32[32,32], index: 1, kind: input, shape index: {}]
  %s2 = inlined_call_operand.vmem [shape: f32[1,32], index: 2, kind: input, shape index: {}]
  %s3 = inlined_call_operand.vmem [shape: f32[128,32], index: 3, kind: output, shape index: {}]
  %s4 = sld [smem:[#allocation0]]
  $region22: #{diora_forward.15} parent=0
    _
  %s6 = ssub.s32 1, %s4
  %s7 = scalar_select 0, %s6, %s4
  // Predicated region
  $region2: #{diora_forward.15} parent=0 // pred_check
    _
  $region3: #{diora_forward.15} parent=0 // pred_check_branch
    %9 = sbr.rel (0) target = $region5
  $region4: #{diora_forward.15} parent=0 // pred_region
    _
  $region5: #{diora_forward.15} parent=0 // pred_fallthru
    _
  // Predicated region
  $region6: #{diora_forward.15} parent=0 // pred_check
    _
  $region7: #{diora_forward.15} parent=0 // pred_check_branch
    %11 = sbr.rel (0) target = $region9
  $region8: #{diora_forward.15} parent=0 // pred_region
    _
  $region9: #{diora_forward.15} parent=0 // pred_fallthru
    _
  // Predicated region
  $region10: #{diora_forward.15} parent=0 // pred_check
    _
  $region11: #{diora_forward.15} parent=0 // pred_check_branch
    %13 = sbr.rel (0) target = $region13
  $region12: #{diora_forward.15} parent=0 // pred_region
    _
  $region13: #{diora_forward.15} parent=0 // pred_fallthru
    _
  %v14 = vld [vmem:[%s0] sm:$0xff]
  %v15 = vld [vmem:[%s0 + $0x8] sm:$0xff]
  %v16 = vld [vmem:[%s0 + $0x10] sm:$0xff]
  %v17 = vld [vmem:[%s0 + $0x18] sm:$0xff]
  %v18 = vld [vmem:[%s0 + $0x20] sm:$0xff]
  %v19 = vld [vmem:[%s0 + $0x28] sm:$0xff]
  %v20 = vld [vmem:[%s0 + $0x30] sm:$0xff]
  %v21 = vld [vmem:[%s0 + $0x38] sm:$0xff]
  %v22 = vld [vmem:[%s0 + $0x40] sm:$0xff]
  %v23 = vld [vmem:[%s0 + $0x48] sm:$0xff]
  %v24 = vld [vmem:[%s0 + $0x50] sm:$0xff]
  %v25 = vld [vmem:[%s0 + $0x58] sm:$0xff]
  %v26 = vld [vmem:[%s0 + $0x60] sm:$0xff]
  %v27 = vld [vmem:[%s0 + $0x68] sm:$0xff]
  %v28 = vld [vmem:[%s0 + $0x70] sm:$0xff]
  %v29 = vld [vmem:[%s0 + $0x78] sm:$0xff]
  %v30 = vld [vmem:[%s1] sm:$0xff]
  %v31 = vld [vmem:[%s1 + $0x8] sm:$0xff]
  %v32 = vld [vmem:[%s1 + $0x10] sm:$0xff]
  %v33 = vld [vmem:[%s1 + $0x18] sm:$0xff]
  %v34 = vld [vmem:[%s2] sm:$0x1]
  %v36 = vlaneseq
  %v37 = vshrl.u32 %v36, 7
  %v38 = vsub.s32 0, %v37
  %v39 = vrot.slane %v34, %v38
  %vm41 = vcmask 261120
  %v43 = vsel %vm41, %v14, 0
  %v46 = vsel %vm41, %v15, 0
  %v49 = vsel %vm41, %v16, 0
  %v52 = vsel %vm41, %v17, 0
  %v55 = vsel %vm41, %v18, 0
  %v58 = vsel %vm41, %v19, 0
  %v61 = vsel %vm41, %v20, 0
  %v64 = vsel %vm41, %v21, 0
  %v67 = vsel %vm41, %v22, 0
  %v70 = vsel %vm41, %v23, 0
  %v73 = vsel %vm41, %v24, 0
  %v76 = vsel %vm41, %v25, 0
  %v79 = vsel %vm41, %v26, 0
  %v82 = vsel %vm41, %v27, 0
  %v85 = vsel %vm41, %v28, 0
  %v88 = vsel %vm41, %v29, 0
  %90 = vmatprep.subr.mxu0 0.0
  %91 = vmatpush1.msra.mxu0 %v30
  %92 = vmatprep.subr.mxu0 0.0
  %93 = vmatpush1.msra.mxu0 %v31
  %94 = vmatprep.subr.mxu0 0.0
  %95 = vmatpush1.msra.mxu0 %v32
  %96 = vmatprep.subr.mxu0 0.0
  %97 = vmatpush1.msra.mxu0 %v33
  %98 = vmatprep.subr.mxu0 0.0
  %99 = vmatpush1.msra.mxu0 0.0
  %100 = vmatprep.subr.mxu0 0.0
  %101 = vmatpush1.msra.mxu0 0.0
  %102 = vmatprep.subr.mxu0 0.0
  %103 = vmatpush1.msra.mxu0 0.0
  %104 = vmatprep.subr.mxu0 0.0
  %105 = vmatpush1.msra.mxu0 0.0
  %106 = vmatprep.subr.mxu0 0.0
  %107 = vmatpush1.msra.mxu0 0.0
  %108 = vmatprep.subr.mxu0 0.0
  %109 = vmatpush1.msra.mxu0 0.0
  %110 = vmatprep.subr.mxu0 0.0
  %111 = vmatpush1.msra.mxu0 0.0
  %112 = vmatprep.subr.mxu0 0.0
  %113 = vmatpush1.msra.mxu0 0.0
  %114 = vmatprep.subr.mxu0 0.0
  %115 = vmatpush1.msra.mxu0 0.0
  %116 = vmatprep.subr.mxu0 0.0
  %117 = vmatpush1.msra.mxu0 0.0
  %118 = vmatprep.subr.mxu0 0.0
  %119 = vmatpush1.msra.mxu0 0.0
  %120 = vmatprep.subr.mxu0 0.0
  %121 = vmatpush1.msra.mxu0 0.0
  %122 = vmatprep.subr.mxu0 0.0
  %123 = vmatpush1.msra.mxu0 0.0
  %124 = vmatprep.subr.mxu0 0.0
  %125 = vmatpush1.msra.mxu0 0.0
  %126 = vmatprep.subr.mxu0 0.0
  %127 = vmatpush1.msra.mxu0 0.0
  %128 = vmatprep.subr.mxu0 0.0
  %129 = vmatpush1.msra.mxu0 0.0
  %130 = vmatprep.subr.mxu0 0.0
  %131 = vmatpush1.msra.mxu0 0.0
  %132 = vmatprep.subr.mxu0 0.0
  %133 = vmatpush1.msra.mxu0 0.0
  %134 = vmatprep.subr.mxu0 0.0
  %135 = vmatpush1.msra.mxu0 0.0
  %136 = vmatprep.subr.mxu0 0.0
  %137 = vmatpush1.msra.mxu0 0.0
  %138 = vmatprep.subr.mxu0 0.0
  %139 = vmatpush1.msra.mxu0 0.0
  %140 = vmatprep.subr.mxu0 0.0
  %141 = vmatpush1.msra.mxu0 0.0
  %142 = vmatprep.subr.mxu0 0.0
  %143 = vmatpush1.msra.mxu0 0.0
  %144 = vmatprep.subr.mxu0 0.0
  %145 = vmatpush1.msra.mxu0 0.0
  %146 = vmatprep.subr.mxu0 0.0
  %147 = vmatpush1.msra.mxu0 0.0
  %148 = vmatprep.subr.mxu0 0.0
  %149 = vmatpush1.msra.mxu0 0.0
  %150 = vmatprep.subr.mxu0 0.0
  %151 = vmatpush1.msra.mxu0 0.0
  %152 = vmatprep.subr.mxu0 0.0
  %153 = vmatpush1.msra.mxu0 0.0
  %154 = vmatprep.mubr.f32.mxu0 0.0
  %155 = vmatmul.mubr.f32.gmra.mrb[0].mxu0 %v43
  %v156 = vpop.f32.mrb[0].mxu0
  %v157 = vadd.f32 %v39, %v156
  %v158 = vpop.f32.mrb[0].mxu0
  %159 = vmatprep.mubr.f32.mxu0 0.0
  %160 = vmatmul.mubr.f32.gmra.mrb[0].mxu0 %v46
  %v161 = vpop.f32.mrb[0].mxu0
  %v162 = vadd.f32 %v39, %v161
  %v163 = vpop.f32.mrb[0].mxu0
  %164 = vmatprep.mubr.f32.mxu0 0.0
  %165 = vmatmul.mubr.f32.gmra.mrb[0].mxu0 %v49
  %v166 = vpop.f32.mrb[0].mxu0
  %v167 = vadd.f32 %v39, %v166
  %v168 = vpop.f32.mrb[0].mxu0
  %169 = vmatprep.mubr.f32.mxu0 0.0
  %170 = vmatmul.mubr.f32.gmra.mrb[0].mxu0 %v52
  %v171 = vpop.f32.mrb[0].mxu0
  %v172 = vadd.f32 %v39, %v171
  %v173 = vpop.f32.mrb[0].mxu0
  %174 = vmatprep.mubr.f32.mxu0 0.0
  %175 = vmatmul.mubr.f32.gmra.mrb[0].mxu0 %v55
  %v176 = vpop.f32.mrb[0].mxu0
  %v177 = vadd.f32 %v39, %v176
  %v178 = vpop.f32.mrb[0].mxu0
  %179 = vmatprep.mubr.f32.mxu0 0.0
  %180 = vmatmul.mubr.f32.gmra.mrb[0].mxu0 %v58
  %v181 = vpop.f32.mrb[0].mxu0
  %v182 = vadd.f32 %v39, %v181
  %v183 = vpop.f32.mrb[0].mxu0
  %184 = vmatprep.mubr.f32.mxu0 0.0
  %185 = vmatmul.mubr.f32.gmra.mrb[0].mxu0 %v61
  %v186 = vpop.f32.mrb[0].mxu0
  %v187 = vadd.f32 %v39, %v186
  %v188 = vpop.f32.mrb[0].mxu0
  %189 = vmatprep.mubr.f32.mxu0 0.0
  %190 = vmatmul.mubr.f32.gmra.mrb[0].mxu0 %v64
  %v191 = vpop.f32.mrb[0].mxu0
  %v192 = vadd.f32 %v39, %v191
  %v193 = vpop.f32.mrb[0].mxu0
  %194 = vmatprep.mubr.f32.mxu0 0.0
  %195 = vmatmul.mubr.f32.gmra.mrb[0].mxu0 %v67
  %v196 = vpop.f32.mrb[0].mxu0
  %v197 = vadd.f32 %v39, %v196
  %v198 = vpop.f32.mrb[0].mxu0
  %199 = vmatprep.mubr.f32.mxu0 0.0
  %200 = vmatmul.mubr.f32.gmra.mrb[0].mxu0 %v70
  %v201 = vpop.f32.mrb[0].mxu0
  %v202 = vadd.f32 %v39, %v201
  %v203 = vpop.f32.mrb[0].mxu0
  %204 = vmatprep.mubr.f32.mxu0 0.0
  %205 = vmatmul.mubr.f32.gmra.mrb[0].mxu0 %v73
  %v206 = vpop.f32.mrb[0].mxu0
  %v207 = vadd.f32 %v39, %v206
  %v208 = vpop.f32.mrb[0].mxu0
  %209 = vmatprep.mubr.f32.mxu0 0.0
  %210 = vmatmul.mubr.f32.gmra.mrb[0].mxu0 %v76
  %v211 = vpop.f32.mrb[0].mxu0
  %v212 = vadd.f32 %v39, %v211
  %v213 = vpop.f32.mrb[0].mxu0
  %214 = vmatprep.mubr.f32.mxu0 0.0
  %215 = vmatmul.mubr.f32.gmra.mrb[0].mxu0 %v79
  %v216 = vpop.f32.mrb[0].mxu0
  %v217 = vadd.f32 %v39, %v216
  %v218 = vpop.f32.mrb[0].mxu0
  %219 = vmatprep.mubr.f32.mxu0 0.0
  %220 = vmatmul.mubr.f32.gmra.mrb[0].mxu0 %v82
  %v221 = vpop.f32.mrb[0].mxu0
  %v222 = vadd.f32 %v39, %v221
  %v223 = vpop.f32.mrb[0].mxu0
  %224 = vmatprep.mubr.f32.mxu0 0.0
  %225 = vmatmul.mubr.f32.gmra.mrb[0].mxu0 %v85
  %v226 = vpop.f32.mrb[0].mxu0
  %v227 = vadd.f32 %v39, %v226
  %v228 = vpop.f32.mrb[0].mxu0
  %229 = vmatprep.mubr.f32.mxu0 0.0
  %230 = vmatmul.mubr.f32.gmra.mrb[0].mxu0 %v88
  %v231 = vpop.f32.mrb[0].mxu0
  %v232 = vadd.f32 %v39, %v231
  %v233 = vpop.f32.mrb[0].mxu0
  %234 = vdwg.mxu0
  %v235 = vtanh.pop %v157
  %v236 = vtanh.pop %v162
  %v237 = vtanh.pop %v167
  %v238 = vtanh.pop %v172
  %v239 = vtanh.pop %v177
  %v240 = vtanh.pop %v182
  %v241 = vtanh.pop %v187
  %v242 = vtanh.pop %v192
  %v243 = vtanh.pop %v197
  %v244 = vtanh.pop %v202
  %v245 = vtanh.pop %v207
  %v246 = vtanh.pop %v212
  %v247 = vtanh.pop %v217
  %v248 = vtanh.pop %v222
  %v249 = vtanh.pop %v227
  %v250 = vtanh.pop %v232
  %v251 = vmul.f32 %v235, %v235
  %v252 = vmul.f32 %v236, %v236
  %v253 = vmul.f32 %v237, %v237
  %v254 = vmul.f32 %v238, %v238
  %v255 = vmul.f32 %v239, %v239
  %v256 = vmul.f32 %v240, %v240
  %v257 = vmul.f32 %v241, %v241
  %v258 = vmul.f32 %v242, %v242
  %v259 = vmul.f32 %v243, %v243
  %v260 = vmul.f32 %v244, %v244
  %v261 = vmul.f32 %v245, %v245
  %v262 = vmul.f32 %v246, %v246
  %v263 = vmul.f32 %v247, %v247
  %v264 = vmul.f32 %v248, %v248
  %v265 = vmul.f32 %v249, %v249
  %v266 = vmul.f32 %v250, %v250
  %v267 = vsel %vm41, %v251, 0.0
  %268 = vadd.xlane.f32.xlu0 %v267
  %v269 = vpop.xlane.xlu0 %268
  %v270 = vsel %vm41, %v252, 0.0
  %271 = vadd.xlane.f32.xlu0 %v270
  %v272 = vpop.xlane.xlu0 %271
  %v273 = vsel %vm41, %v253, 0.0
  %274 = vadd.xlane.f32.xlu0 %v273
  %v275 = vpop.xlane.xlu0 %274
  %v276 = vsel %vm41, %v254, 0.0
  %277 = vadd.xlane.f32.xlu0 %v276
  %v278 = vpop.xlane.xlu0 %277
  %v279 = vsel %vm41, %v255, 0.0
  %280 = vadd.xlane.f32.xlu0 %v279
  %v281 = vpop.xlane.xlu0 %280
  %v282 = vsel %vm41, %v256, 0.0
  %283 = vadd.xlane.f32.xlu0 %v282
  %v284 = vpop.xlane.xlu0 %283
  %v285 = vsel %vm41, %v257, 0.0
  %286 = vadd.xlane.f32.xlu0 %v285
  %v287 = vpop.xlane.xlu0 %286
  %v288 = vsel %vm41, %v258, 0.0
  %289 = vadd.xlane.f32.xlu0 %v288
  %v290 = vpop.xlane.xlu0 %289
  %v291 = vsel %vm41, %v259, 0.0
  %292 = vadd.xlane.f32.xlu0 %v291
  %v293 = vpop.xlane.xlu0 %292
  %v294 = vsel %vm41, %v260, 0.0
  %295 = vadd.xlane.f32.xlu0 %v294
  %v296 = vpop.xlane.xlu0 %295
  %v297 = vsel %vm41, %v261, 0.0
  %298 = vadd.xlane.f32.xlu0 %v297
  %v299 = vpop.xlane.xlu0 %298
  %v300 = vsel %vm41, %v262, 0.0
  %301 = vadd.xlane.f32.xlu0 %v300
  %v302 = vpop.xlane.xlu0 %301
  %v303 = vsel %vm41, %v263, 0.0
  %304 = vadd.xlane.f32.xlu0 %v303
  %v305 = vpop.xlane.xlu0 %304
  %v306 = vsel %vm41, %v264, 0.0
  %307 = vadd.xlane.f32.xlu0 %v306
  %v308 = vpop.xlane.xlu0 %307
  %v309 = vsel %vm41, %v265, 0.0
  %310 = vadd.xlane.f32.xlu0 %v309
  %v311 = vpop.xlane.xlu0 %310
  %v312 = vsel %vm41, %v266, 0.0
  %313 = vadd.xlane.f32.xlu0 %v312
  %v314 = vpop.xlane.xlu0 %313
  %v315 = vrsqrt.pop %v269
  %v316 = vmul.f32 %v269, %v315
  %vm317 = vcmp.eq.f32.partialorder %v269, inf
  %v318 = vsel %vm317, %v269, %v316
  %vm319 = vcmp.eq.f32.partialorder %v269, 0.0
  %v320 = vand.u32 %v269, 2147483648
  %v321 = vsel %vm319, %v320, %v318
  %v322 = vrsqrt.pop %v272
  %v323 = vmul.f32 %v272, %v322
  %vm324 = vcmp.eq.f32.partialorder %v272, inf
  %v325 = vsel %vm324, %v272, %v323
  %vm326 = vcmp.eq.f32.partialorder %v272, 0.0
  %v327 = vand.u32 %v272, 2147483648
  %v328 = vsel %vm326, %v327, %v325
  %v329 = vrsqrt.pop %v275
  %v330 = vmul.f32 %v275, %v329
  %vm331 = vcmp.eq.f32.partialorder %v275, inf
  %v332 = vsel %vm331, %v275, %v330
  %vm333 = vcmp.eq.f32.partialorder %v275, 0.0
  %v334 = vand.u32 %v275, 2147483648
  %v335 = vsel %vm333, %v334, %v332
  %v336 = vrsqrt.pop %v278
  %v337 = vmul.f32 %v278, %v336
  %vm338 = vcmp.eq.f32.partialorder %v278, inf
  %v339 = vsel %vm338, %v278, %v337
  %vm340 = vcmp.eq.f32.partialorder %v278, 0.0
  %v341 = vand.u32 %v278, 2147483648
  %v342 = vsel %vm340, %v341, %v339
  %v343 = vrsqrt.pop %v281
  %v344 = vmul.f32 %v281, %v343
  %vm345 = vcmp.eq.f32.partialorder %v281, inf
  %v346 = vsel %vm345, %v281, %v344
  %vm347 = vcmp.eq.f32.partialorder %v281, 0.0
  %v348 = vand.u32 %v281, 2147483648
  %v349 = vsel %vm347, %v348, %v346
  %v350 = vrsqrt.pop %v284
  %v351 = vmul.f32 %v284, %v350
  %vm352 = vcmp.eq.f32.partialorder %v284, inf
  %v353 = vsel %vm352, %v284, %v351
  %vm354 = vcmp.eq.f32.partialorder %v284, 0.0
  %v355 = vand.u32 %v284, 2147483648
  %v356 = vsel %vm354, %v355, %v353
  %v357 = vrsqrt.pop %v287
  %v358 = vmul.f32 %v287, %v357
  %vm359 = vcmp.eq.f32.partialorder %v287, inf
  %v360 = vsel %vm359, %v287, %v358
  %vm361 = vcmp.eq.f32.partialorder %v287, 0.0
  %v362 = vand.u32 %v287, 2147483648
  %v363 = vsel %vm361, %v362, %v360
  %v364 = vrsqrt.pop %v290
  %v365 = vmul.f32 %v290, %v364
  %vm366 = vcmp.eq.f32.partialorder %v290, inf
  %v367 = vsel %vm366, %v290, %v365
  %vm368 = vcmp.eq.f32.partialorder %v290, 0.0
  %v369 = vand.u32 %v290, 2147483648
  %v370 = vsel %vm368, %v369, %v367
  %v371 = vrsqrt.pop %v293
  %v372 = vmul.f32 %v293, %v371
  %vm373 = vcmp.eq.f32.partialorder %v293, inf
  %v374 = vsel %vm373, %v293, %v372
  %vm375 = vcmp.eq.f32.partialorder %v293, 0.0
  %v376 = vand.u32 %v293, 2147483648
  %v377 = vsel %vm375, %v376, %v374
  %v378 = vrsqrt.pop %v296
  %v379 = vmul.f32 %v296, %v378
  %vm380 = vcmp.eq.f32.partialorder %v296, inf
  %v381 = vsel %vm380, %v296, %v379
  %vm382 = vcmp.eq.f32.partialorder %v296, 0.0
  %v383 = vand.u32 %v296, 2147483648
  %v384 = vsel %vm382, %v383, %v381
  %v385 = vrsqrt.pop %v299
  %v386 = vmul.f32 %v299, %v385
  %vm387 = vcmp.eq.f32.partialorder %v299, inf
  %v388 = vsel %vm387, %v299, %v386
  %vm389 = vcmp.eq.f32.partialorder %v299, 0.0
  %v390 = vand.u32 %v299, 2147483648
  %v391 = vsel %vm389, %v390, %v388
  %v392 = vrsqrt.pop %v302
  %v393 = vmul.f32 %v302, %v392
  %vm394 = vcmp.eq.f32.partialorder %v302, inf
  %v395 = vsel %vm394, %v302, %v393
  %vm396 = vcmp.eq.f32.partialorder %v302, 0.0
  %v397 = vand.u32 %v302, 2147483648
  %v398 = vsel %vm396, %v397, %v395
  %v399 = vrsqrt.pop %v305
  %v400 = vmul.f32 %v305, %v399
  %vm401 = vcmp.eq.f32.partialorder %v305, inf
  %v402 = vsel %vm401, %v305, %v400
  %vm403 = vcmp.eq.f32.partialorder %v305, 0.0
  %v404 = vand.u32 %v305, 2147483648
  %v405 = vsel %vm403, %v404, %v402
  %v406 = vrsqrt.pop %v308
  %v407 = vmul.f32 %v308, %v406
  %vm408 = vcmp.eq.f32.partialorder %v308, inf
  %v409 = vsel %vm408, %v308, %v407
  %vm410 = vcmp.eq.f32.partialorder %v308, 0.0
  %v411 = vand.u32 %v308, 2147483648
  %v412 = vsel %vm410, %v411, %v409
  %v413 = vrsqrt.pop %v311
  %v414 = vmul.f32 %v311, %v413
  %vm415 = vcmp.eq.f32.partialorder %v311, inf
  %v416 = vsel %vm415, %v311, %v414
  %vm417 = vcmp.eq.f32.partialorder %v311, 0.0
  %v418 = vand.u32 %v311, 2147483648
  %v419 = vsel %vm417, %v418, %v416
  %v420 = vrsqrt.pop %v314
  %v421 = vmul.f32 %v314, %v420
  %vm422 = vcmp.eq.f32.partialorder %v314, inf
  %v423 = vsel %vm422, %v314, %v421
  %vm424 = vcmp.eq.f32.partialorder %v314, 0.0
  %v425 = vand.u32 %v314, 2147483648
  %v426 = vsel %vm424, %v425, %v423
  %v427 = vmax.f32 %v321, 1e-08
  %v428 = vmax.f32 %v328, 1e-08
  %v429 = vmax.f32 %v335, 1e-08
  %v430 = vmax.f32 %v342, 1e-08
  %v431 = vmax.f32 %v349, 1e-08
  %v432 = vmax.f32 %v356, 1e-08
  %v433 = vmax.f32 %v363, 1e-08
  %v434 = vmax.f32 %v370, 1e-08
  %v435 = vmax.f32 %v377, 1e-08
  %v436 = vmax.f32 %v384, 1e-08
  %v437 = vmax.f32 %v391, 1e-08
  %v438 = vmax.f32 %v398, 1e-08
  %v439 = vmax.f32 %v405, 1e-08
  %v440 = vmax.f32 %v412, 1e-08
  %v441 = vmax.f32 %v419, 1e-08
  %v442 = vmax.f32 %v426, 1e-08
  %v443 = vrcp.pop %v427
  %v444 = vmul.f32 %v235, %v443
  %v445 = vrcp.pop %v428
  %v446 = vmul.f32 %v236, %v445
  %v447 = vrcp.pop %v429
  %v448 = vmul.f32 %v237, %v447
  %v449 = vrcp.pop %v430
  %v450 = vmul.f32 %v238, %v449
  %v451 = vrcp.pop %v431
  %v452 = vmul.f32 %v239, %v451
  %v453 = vrcp.pop %v432
  %v454 = vmul.f32 %v240, %v453
  %v455 = vrcp.pop %v433
  %v456 = vmul.f32 %v241, %v455
  %v457 = vrcp.pop %v434
  %v458 = vmul.f32 %v242, %v457
  %v459 = vrcp.pop %v435
  %v460 = vmul.f32 %v243, %v459
  %v461 = vrcp.pop %v436
  %v462 = vmul.f32 %v244, %v461
  %v463 = vrcp.pop %v437
  %v464 = vmul.f32 %v245, %v463
  %v465 = vrcp.pop %v438
  %v466 = vmul.f32 %v246, %v465
  %v467 = vrcp.pop %v439
  %v468 = vmul.f32 %v247, %v467
  %v469 = vrcp.pop %v440
  %v470 = vmul.f32 %v248, %v469
  %v471 = vrcp.pop %v441
  %v472 = vmul.f32 %v249, %v471
  %v473 = vrcp.pop %v442
  %v474 = vmul.f32 %v250, %v473
  %475 = vst.msk [vmem:[%s3] sm:$0xff] %vm41, %v444
  %476 = vst.msk [vmem:[%s3 + $0x8] sm:$0xff] %vm41, %v446
  %477 = vst.msk [vmem:[%s3 + $0x10] sm:$0xff] %vm41, %v448
  %478 = vst.msk [vmem:[%s3 + $0x18] sm:$0xff] %vm41, %v450
  %479 = vst.msk [vmem:[%s3 + $0x20] sm:$0xff] %vm41, %v452
  %480 = vst.msk [vmem:[%s3 + $0x28] sm:$0xff] %vm41, %v454
  %481 = vst.msk [vmem:[%s3 + $0x30] sm:$0xff] %vm41, %v456
  %482 = vst.msk [vmem:[%s3 + $0x38] sm:$0xff] %vm41, %v458
  %483 = vst.msk [vmem:[%s3 + $0x40] sm:$0xff] %vm41, %v460
  %484 = vst.msk [vmem:[%s3 + $0x48] sm:$0xff] %vm41, %v462
  %485 = vst.msk [vmem:[%s3 + $0x50] sm:$0xff] %vm41, %v464
  %486 = vst.msk [vmem:[%s3 + $0x58] sm:$0xff] %vm41, %v466
  %487 = vst.msk [vmem:[%s3 + $0x60] sm:$0xff] %vm41, %v468
  %488 = vst.msk [vmem:[%s3 + $0x68] sm:$0xff] %vm41, %v470
  %489 = vst.msk [vmem:[%s3 + $0x70] sm:$0xff] %vm41, %v472
  %490 = vst.msk [vmem:[%s3 + $0x78] sm:$0xff] %vm41, %v474
  // Predicated region
  $region14: #{diora_forward.15} parent=0 // pred_check
    _
  $region15: #{diora_forward.15} parent=0 // pred_check_branch
    %492 = sbr.rel (0) target = $region17
  $region16: #{diora_forward.15} parent=0 // pred_region
    _
  $region17: #{diora_forward.15} parent=0 // pred_fallthru
    _
  // Predicated region
  $region18: #{diora_forward.15} parent=0 // pred_check
    _
  $region19: #{diora_forward.15} parent=0 // pred_check_branch
    %494 = sbr.rel (0) target = $region21
  $region20: #{diora_forward.15} parent=0 // pred_region
    _
  $region21: #{diora_forward.15} parent=0 // pred_fallthru
    _

// kernel: diora_forward.16
$region0: #{diora_forward.16}
  #allocation0 [shape = 'u32[]', space=smem, size = 0x4, offset = 0x4, fixed_abs, tag = 'smem constant byte address 0x4 - core index']
  #allocation1 [shape = 'u32[144,128]{1,0:T(1,128)}', space=vmem, size = 0x12000, scoped, tag = 'internal scratch']
  %s0 = inlined_call_operand.vmem [shape: f32[128,32], index: 0, kind: input, shape index: {}]
  %s1 = inlined_call_operand.vmem [shape: f32[128,32], index: 1, kind: input, shape index: {}]
  %s2 = inlined_call_operand.vmem [shape: f32[128,1], index: 2, kind: input, shape index: {}]
  %s3 = inlined_call_operand.vmem [shape: f32[128,1], index: 3, kind: input, shape index: {}]
  %s4 = inlined_call_operand.vmem [shape: f32[32,32], index: 4, kind: input, shape index: {}]
  %s5 = inlined_call_operand.vmem [shape: f32[32,32], index: 5, kind: input, shape index: {}]
  %s6 = inlined_call_operand.vmem [shape: f32[1,32], index: 6, kind: input, shape index: {}]
  %s7 = inlined_call_operand.vmem [shape: f32[32,32], index: 7, kind: input, shape index: {}]
  %s8 = inlined_call_operand.vmem [shape: f32[1,32], index: 8, kind: input, shape index: {}]
  %s9 = inlined_call_operand.vmem [shape: f32[32,32], index: 9, kind: input, shape index: {}]
  %s10 = inlined_call_operand.vmem [shape: f32[128,32], index: 10, kind: output, shape index: {0}]
  %s11 = inlined_call_operand.vmem [shape: f32[128,1], index: 11, kind: output, shape index: {1}]
  %12 = xla_tuple %s10, %s11
  %s13 = sld [smem:[#allocation0]]
  $region58: #{diora_forward.16} parent=0
    _
  %s15 = ssub.s32 1, %s13
  %s16 = scalar_select 0, %s15, %s13
  // Predicated region
  $region2: #{diora_forward.16} parent=0 // pred_check
    _
  $region3: #{diora_forward.16} parent=0 // pred_check_branch
    %18 = sbr.rel (0) target = $region5
  $region4: #{diora_forward.16} parent=0 // pred_region
    _
  $region5: #{diora_forward.16} parent=0 // pred_fallthru
    _
  // Predicated region
  $region6: #{diora_forward.16} parent=0 // pred_check
    _
  $region7: #{diora_forward.16} parent=0 // pred_check_branch
    %20 = sbr.rel (0) target = $region9
  $region8: #{diora_forward.16} parent=0 // pred_region
    _
  $region9: #{diora_forward.16} parent=0 // pred_fallthru
    _
  // Predicated region
  $region10: #{diora_forward.16} parent=0 // pred_check
    _
  $region11: #{diora_forward.16} parent=0 // pred_check_branch
    %22 = sbr.rel (0) target = $region13
  $region12: #{diora_forward.16} parent=0 // pred_region
    _
  $region13: #{diora_forward.16} parent=0 // pred_fallthru
    _
  // Predicated region
  $region14: #{diora_forward.16} parent=0 // pred_check
    _
  $region15: #{diora_forward.16} parent=0 // pred_check_branch
    %24 = sbr.rel (0) target = $region17
  $region16: #{diora_forward.16} parent=0 // pred_region
    _
  $region17: #{diora_forward.16} parent=0 // pred_fallthru
    _
  // Predicated region
  $region18: #{diora_forward.16} parent=0 // pred_check
    _
  $region19: #{diora_forward.16} parent=0 // pred_check_branch
    %26 = sbr.rel (0) target = $region21
  $region20: #{diora_forward.16} parent=0 // pred_region
    _
  $region21: #{diora_forward.16} parent=0 // pred_fallthru
    _
  // Predicated region
  $region22: #{diora_forward.16} parent=0 // pred_check
    _
  $region23: #{diora_forward.16} parent=0 // pred_check_branch
    %28 = sbr.rel (0) target = $region25
  $region24: #{diora_forward.16} parent=0 // pred_region
    _
  $region25: #{diora_forward.16} parent=0 // pred_fallthru
    _
  // Predicated region
  $region26: #{diora_forward.16} parent=0 // pred_check
    _
  $region27: #{diora_forward.16} parent=0 // pred_check_branch
    %30 = sbr.rel (0) target = $region29
  $region28: #{diora_forward.16} parent=0 // pred_region
    _
  $region29: #{diora_forward.16} parent=0 // pred_fallthru
    _
  // Predicated region
  $region30: #{diora_forward.16} parent=0 // pred_check
    _
  $region31: #{diora_forward.16} parent=0 // pred_check_branch
    %32 = sbr.rel (0) target = $region33
  $region32: #{diora_forward.16} parent=0 // pred_region
    _
  $region33: #{diora_forward.16} parent=0 // pred_fallthru
    _
  // Predicated region
  $region34: #{diora_forward.16} parent=0 // pred_check
    _
  $region35: #{diora_forward.16} parent=0 // pred_check_branch
    %34 = sbr.rel (0) target = $region37
  $region36: #{diora_forward.16} parent=0 // pred_region
    _
  $region37: #{diora_forward.16} parent=0 // pred_fallthru
    _
  // Predicated region
  $region38: #{diora_forward.16} parent=0 // pred_check
    _
  $region39: #{diora_forward.16} parent=0 // pred_check_branch
    %36 = sbr.rel (0) target = $region41
  $region40: #{diora_forward.16} parent=0 // pred_region
    _
  $region41: #{diora_forward.16} parent=0 // pred_fallthru
    _
  %v37 = vld [vmem:[%s0] sm:$0xff]
  %v38 = vld [vmem:[%s0 + $0x8] sm:$0xff]
  %v39 = vld [vmem:[%s0 + $0x10] sm:$0xff]
  %v40 = vld [vmem:[%s0 + $0x18] sm:$0xff]
  %v41 = vld [vmem:[%s0 + $0x20] sm:$0xff]
  %v42 = vld [vmem:[%s0 + $0x28] sm:$0xff]
  %v43 = vld [vmem:[%s0 + $0x30] sm:$0xff]
  %v44 = vld [vmem:[%s0 + $0x38] sm:$0xff]
  %v45 = vld [vmem:[%s0 + $0x40] sm:$0xff]
  %v46 = vld [vmem:[%s0 + $0x48] sm:$0xff]
  %v47 = vld [vmem:[%s0 + $0x50] sm:$0xff]
  %v48 = vld [vmem:[%s0 + $0x58] sm:$0xff]
  %v49 = vld [vmem:[%s0 + $0x60] sm:$0xff]
  %v50 = vld [vmem:[%s0 + $0x68] sm:$0xff]
  %v51 = vld [vmem:[%s0 + $0x70] sm:$0xff]
  %v52 = vld [vmem:[%s0 + $0x78] sm:$0xff]
  %v53 = vld [vmem:[%s1] sm:$0xff]
  %v54 = vld [vmem:[%s1 + $0x8] sm:$0xff]
  %v55 = vld [vmem:[%s1 + $0x10] sm:$0xff]
  %v56 = vld [vmem:[%s1 + $0x18] sm:$0xff]
  %v57 = vld [vmem:[%s1 + $0x20] sm:$0xff]
  %v58 = vld [vmem:[%s1 + $0x28] sm:$0xff]
  %v59 = vld [vmem:[%s1 + $0x30] sm:$0xff]
  %v60 = vld [vmem:[%s1 + $0x38] sm:$0xff]
  %v61 = vld [vmem:[%s1 + $0x40] sm:$0xff]
  %v62 = vld [vmem:[%s1 + $0x48] sm:$0xff]
  %v63 = vld [vmem:[%s1 + $0x50] sm:$0xff]
  %v64 = vld [vmem:[%s1 + $0x58] sm:$0xff]
  %v65 = vld [vmem:[%s1 + $0x60] sm:$0xff]
  %v66 = vld [vmem:[%s1 + $0x68] sm:$0xff]
  %v67 = vld [vmem:[%s1 + $0x70] sm:$0xff]
  %v68 = vld [vmem:[%s1 + $0x78] sm:$0xff]
  %v69 = vld [vmem:[%s4] sm:$0xff]
  %v70 = vld [vmem:[%s4 + $0x8] sm:$0xff]
  %v71 = vld [vmem:[%s4 + $0x10] sm:$0xff]
  %v72 = vld [vmem:[%s4 + $0x18] sm:$0xff]
  %v73 = vld [vmem:[%s5] sm:$0xff]
  %v74 = vld [vmem:[%s5 + $0x8] sm:$0xff]
  %v75 = vld [vmem:[%s5 + $0x10] sm:$0xff]
  %v76 = vld [vmem:[%s5 + $0x18] sm:$0xff]
  %vm77 = vcmask 261120
  %v79 = vsel %vm77, %v53, 0
  %v82 = vsel %vm77, %v54, 0
  %v85 = vsel %vm77, %v55, 0
  %v88 = vsel %vm77, %v56, 0
  %v91 = vsel %vm77, %v57, 0
  %v94 = vsel %vm77, %v58, 0
  %v97 = vsel %vm77, %v59, 0
  %v100 = vsel %vm77, %v60, 0
  %v103 = vsel %vm77, %v61, 0
  %v106 = vsel %vm77, %v62, 0
  %v109 = vsel %vm77, %v63, 0
  %v112 = vsel %vm77, %v64, 0
  %v115 = vsel %vm77, %v65, 0
  %v118 = vsel %vm77, %v66, 0
  %v121 = vsel %vm77, %v67, 0
  %v124 = vsel %vm77, %v68, 0
  %126 = vmatprep.subr.mxu0 0.0
  %127 = vmatpush1.msra.mxu0 %v73
  %128 = vmatprep.subr.mxu0 0.0
  %129 = vmatpush1.msra.mxu0 %v74
  %130 = vmatprep.subr.mxu0 0.0
  %131 = vmatpush1.msra.mxu0 %v75
  %132 = vmatprep.subr.mxu0 0.0
  %133 = vmatpush1.msra.mxu0 %v76
  %134 = vmatprep.subr.mxu0 0.0
  %135 = vmatpush1.msra.mxu0 0.0
  %136 = vmatprep.subr.mxu0 0.0
  %137 = vmatpush1.msra.mxu0 0.0
  %138 = vmatprep.subr.mxu0 0.0
  %139 = vmatpush1.msra.mxu0 0.0
  %140 = vmatprep.subr.mxu0 0.0
  %141 = vmatpush1.msra.mxu0 0.0
  %142 = vmatprep.subr.mxu0 0.0
  %143 = vmatpush1.msra.mxu0 0.0
  %144 = vmatprep.subr.mxu0 0.0
  %145 = vmatpush1.msra.mxu0 0.0
  %146 = vmatprep.subr.mxu0 0.0
  %147 = vmatpush1.msra.mxu0 0.0
  %148 = vmatprep.subr.mxu0 0.0
  %149 = vmatpush1.msra.mxu0 0.0
  %150 = vmatprep.subr.mxu0 0.0
  %151 = vmatpush1.msra.mxu0 0.0
  %152 = vmatprep.subr.mxu0 0.0
  %153 = vmatpush1.msra.mxu0 0.0
  %154 = vmatprep.subr.mxu0 0.0
  %155 = vmatpush1.msra.mxu0 0.0
  %156 = vmatprep.subr.mxu0 0.0
  %157 = vmatpush1.msra.mxu0 0.0
  %158 = vmatprep.subr.mxu0 0.0
  %159 = vmatpush1.msra.mxu0 0.0
  %160 = vmatprep.subr.mxu0 0.0
  %161 = vmatpush1.msra.mxu0 0.0
  %162 = vmatprep.subr.mxu0 0.0
  %163 = vmatpush1.msra.mxu0 0.0
  %164 = vmatprep.subr.mxu0 0.0
  %165 = vmatpush1.msra.mxu0 0.0
  %166 = vmatprep.subr.mxu0 0.0
  %167 = vmatpush1.msra.mxu0 0.0
  %168 = vmatprep.subr.mxu0 0.0
  %169 = vmatpush1.msra.mxu0 0.0
  %170 = vmatprep.subr.mxu0 0.0
  %171 = vmatpush1.msra.mxu0 0.0
  %172 = vmatprep.subr.mxu0 0.0
  %173 = vmatpush1.msra.mxu0 0.0
  %174 = vmatprep.subr.mxu0 0.0
  %175 = vmatpush1.msra.mxu0 0.0
  %176 = vmatprep.subr.mxu0 0.0
  %177 = vmatpush1.msra.mxu0 0.0
  %178 = vmatprep.subr.mxu0 0.0
  %179 = vmatpush1.msra.mxu0 0.0
  %180 = vmatprep.subr.mxu0 0.0
  %181 = vmatpush1.msra.mxu0 0.0
  %182 = vmatprep.subr.mxu0 0.0
  %183 = vmatpush1.msra.mxu0 0.0
  %184 = vmatprep.subr.mxu0 0.0
  %185 = vmatpush1.msra.mxu0 0.0
  %186 = vmatprep.subr.mxu0 0.0
  %187 = vmatpush1.msra.mxu0 0.0
  %188 = vmatprep.subr.mxu0 0.0
  %189 = vmatpush1.msra.mxu0 0.0
  %190 = vmatprep.mubr.f32.mxu0 0.0
  %191 = vmatmul.mubr.f32.gmra.mrb[0].mxu0 %v79
  %v192 = vpop.f32.mrb[0].mxu0
  %v193 = vadd.f32 0.0, %v192
  %v194 = vpop.f32.mrb[0].mxu0
  %195 = vmatprep.mubr.f32.mxu0 0.0
  %196 = vmatmul.mubr.f32.gmra.mrb[0].mxu0 %v82
  %v197 = vpop.f32.mrb[0].mxu0
  %v198 = vadd.f32 0.0, %v197
  %v199 = vpop.f32.mrb[0].mxu0
  %200 = vmatprep.mubr.f32.mxu0 0.0
  %201 = vmatmul.mubr.f32.gmra.mrb[0].mxu0 %v85
  %v202 = vpop.f32.mrb[0].mxu0
  %v203 = vadd.f32 0.0, %v202
  %v204 = vpop.f32.mrb[0].mxu0
  %205 = vmatprep.mubr.f32.mxu0 0.0
  %206 = vmatmul.mubr.f32.gmra.mrb[0].mxu0 %v88
  %v207 = vpop.f32.mrb[0].mxu0
  %v208 = vadd.f32 0.0, %v207
  %v209 = vpop.f32.mrb[0].mxu0
  %210 = vmatprep.mubr.f32.mxu0 0.0
  %211 = vmatmul.mubr.f32.gmra.mrb[0].mxu0 %v91
  %v212 = vpop.f32.mrb[0].mxu0
  %v213 = vadd.f32 0.0, %v212
  %v214 = vpop.f32.mrb[0].mxu0
  %215 = vmatprep.mubr.f32.mxu0 0.0
  %216 = vmatmul.mubr.f32.gmra.mrb[0].mxu0 %v94
  %v217 = vpop.f32.mrb[0].mxu0
  %v218 = vadd.f32 0.0, %v217
  %v219 = vpop.f32.mrb[0].mxu0
  %220 = vmatprep.mubr.f32.mxu0 0.0
  %221 = vmatmul.mubr.f32.gmra.mrb[0].mxu0 %v97
  %v222 = vpop.f32.mrb[0].mxu0
  %v223 = vadd.f32 0.0, %v222
  %v224 = vpop.f32.mrb[0].mxu0
  %225 = vmatprep.mubr.f32.mxu0 0.0
  %226 = vmatmul.mubr.f32.gmra.mrb[0].mxu0 %v100
  %v227 = vpop.f32.mrb[0].mxu0
  %v228 = vadd.f32 0.0, %v227
  %v229 = vpop.f32.mrb[0].mxu0
  %230 = vmatprep.mubr.f32.mxu0 0.0
  %231 = vmatmul.mubr.f32.gmra.mrb[0].mxu0 %v103
  %v232 = vpop.f32.mrb[0].mxu0
  %v233 = vadd.f32 0.0, %v232
  %v234 = vpop.f32.mrb[0].mxu0
  %235 = vmatprep.mubr.f32.mxu0 0.0
  %236 = vmatmul.mubr.f32.gmra.mrb[0].mxu0 %v106
  %v237 = vpop.f32.mrb[0].mxu0
  %v238 = vadd.f32 0.0, %v237
  %v239 = vpop.f32.mrb[0].mxu0
  %240 = vmatprep.mubr.f32.mxu0 0.0
  %241 = vmatmul.mubr.f32.gmra.mrb[0].mxu0 %v109
  %v242 = vpop.f32.mrb[0].mxu0
  %v243 = vadd.f32 0.0, %v242
  %v244 = vpop.f32.mrb[0].mxu0
  %245 = vmatprep.mubr.f32.mxu0 0.0
  %246 = vmatmul.mubr.f32.gmra.mrb[0].mxu0 %v112
  %v247 = vpop.f32.mrb[0].mxu0
  %v248 = vadd.f32 0.0, %v247
  %v249 = vpop.f32.mrb[0].mxu0
  %250 = vmatprep.mubr.f32.mxu0 0.0
  %251 = vmatmul.mubr.f32.gmra.mrb[0].mxu0 %v115
  %v252 = vpop.f32.mrb[0].mxu0
  %v253 = vadd.f32 0.0, %v252
  %v254 = vpop.f32.mrb[0].mxu0
  %255 = vmatprep.mubr.f32.mxu0 0.0
  %256 = vmatmul.mubr.f32.gmra.mrb[0].mxu0 %v118
  %v257 = vpop.f32.mrb[0].mxu0
  %v258 = vadd.f32 0.0, %v257
  %v259 = vpop.f32.mrb[0].mxu0
  %260 = vmatprep.mubr.f32.mxu0 0.0
  %261 = vmatmul.mubr.f32.gmra.mrb[0].mxu0 %v121
  %v262 = vpop.f32.mrb[0].mxu0
  %v263 = vadd.f32 0.0, %v262
  %v264 = vpop.f32.mrb[0].mxu0
  %265 = vmatprep.mubr.f32.mxu0 0.0
  %266 = vmatmul.mubr.f32.gmra.mrb[0].mxu0 %v124
  %v267 = vpop.f32.mrb[0].mxu0
  %v268 = vadd.f32 0.0, %v267
  %v269 = vpop.f32.mrb[0].mxu0
  %270 = vdwg.mxu0
  %v272 = vsel %vm77, %v37, 0
  %v275 = vsel %vm77, %v38, 0
  %v278 = vsel %vm77, %v39, 0
  %v281 = vsel %vm77, %v40, 0
  %v284 = vsel %vm77, %v41, 0
  %v287 = vsel %vm77, %v42, 0
  %v290 = vsel %vm77, %v43, 0
  %v293 = vsel %vm77, %v44, 0
  %v296 = vsel %vm77, %v45, 0
  %v299 = vsel %vm77, %v46, 0
  %v302 = vsel %vm77, %v47, 0
  %v305 = vsel %vm77, %v48, 0
  %v308 = vsel %vm77, %v49, 0
  %v311 = vsel %vm77, %v50, 0
  %v314 = vsel %vm77, %v51, 0
  %v317 = vsel %vm77, %v52, 0
  %319 = vmatprep.subr.mxu0 0.0
  %320 = vmatpush1.msra.mxu0 %v69
  %321 = vmatprep.subr.mxu0 0.0
  %322 = vmatpush1.msra.mxu0 %v70
  %323 = vmatprep.subr.mxu0 0.0
  %324 = vmatpush1.msra.mxu0 %v71
  %325 = vmatprep.subr.mxu0 0.0
  %326 = vmatpush1.msra.mxu0 %v72
  %327 = vmatprep.subr.mxu0 0.0
  %328 = vmatpush1.msra.mxu0 0.0
  %329 = vmatprep.subr.mxu0 0.0
  %330 = vmatpush1.msra.mxu0 0.0
  %331 = vmatprep.subr.mxu0 0.0
  %332 = vmatpush1.msra.mxu0 0.0
  %333 = vmatprep.subr.mxu0 0.0
  %334 = vmatpush1.msra.mxu0 0.0
  %335 = vmatprep.subr.mxu0 0.0
  %336 = vmatpush1.msra.mxu0 0.0
  %337 = vmatprep.subr.mxu0 0.0
  %338 = vmatpush1.msra.mxu0 0.0
  %339 = vmatprep.subr.mxu0 0.0
  %340 = vmatpush1.msra.mxu0 0.0
  %341 = vmatprep.subr.mxu0 0.0
  %342 = vmatpush1.msra.mxu0 0.0
  %343 = vmatprep.subr.mxu0 0.0
  %344 = vmatpush1.msra.mxu0 0.0
  %345 = vmatprep.subr.mxu0 0.0
  %346 = vmatpush1.msra.mxu0 0.0
  %347 = vmatprep.subr.mxu0 0.0
  %348 = vmatpush1.msra.mxu0 0.0
  %349 = vmatprep.subr.mxu0 0.0
  %350 = vmatpush1.msra.mxu0 0.0
  %351 = vmatprep.subr.mxu0 0.0
  %352 = vmatpush1.msra.mxu0 0.0
  %353 = vmatprep.subr.mxu0 0.0
  %354 = vmatpush1.msra.mxu0 0.0
  %355 = vmatprep.subr.mxu0 0.0
  %356 = vmatpush1.msra.mxu0 0.0
  %357 = vmatprep.subr.mxu0 0.0
  %358 = vmatpush1.msra.mxu0 0.0
  %359 = vmatprep.subr.mxu0 0.0
  %360 = vmatpush1.msra.mxu0 0.0
  %361 = vmatprep.subr.mxu0 0.0
  %362 = vmatpush1.msra.mxu0 0.0
  %363 = vmatprep.subr.mxu0 0.0
  %364 = vmatpush1.msra.mxu0 0.0
  %365 = vmatprep.subr.mxu0 0.0
  %366 = vmatpush1.msra.mxu0 0.0
  %367 = vmatprep.subr.mxu0 0.0
  %368 = vmatpush1.msra.mxu0 0.0
  %369 = vmatprep.subr.mxu0 0.0
  %370 = vmatpush1.msra.mxu0 0.0
  %371 = vmatprep.subr.mxu0 0.0
  %372 = vmatpush1.msra.mxu0 0.0
  %373 = vmatprep.subr.mxu0 0.0
  %374 = vmatpush1.msra.mxu0 0.0
  %375 = vmatprep.subr.mxu0 0.0
  %376 = vmatpush1.msra.mxu0 0.0
  %377 = vmatprep.subr.mxu0 0.0
  %378 = vmatpush1.msra.mxu0 0.0
  %379 = vmatprep.subr.mxu0 0.0
  %380 = vmatpush1.msra.mxu0 0.0
  %381 = vmatprep.subr.mxu0 0.0
  %382 = vmatpush1.msra.mxu0 0.0
  %383 = vmatprep.mubr.f32.mxu0 0.0
  %384 = vmatmul.mubr.f32.gmra.mrb[0].mxu0 %v272
  %v385 = vpop.f32.mrb[0].mxu0
  %v386 = vadd.f32 %v193, %v385
  %v387 = vpop.f32.mrb[0].mxu0
  %388 = vmatprep.mubr.f32.mxu0 0.0
  %389 = vmatmul.mubr.f32.gmra.mrb[0].mxu0 %v275
  %v390 = vpop.f32.mrb[0].mxu0
  %v391 = vadd.f32 %v198, %v390
  %v392 = vpop.f32.mrb[0].mxu0
  %393 = vmatprep.mubr.f32.mxu0 0.0
  %394 = vmatmul.mubr.f32.gmra.mrb[0].mxu0 %v278
  %v395 = vpop.f32.mrb[0].mxu0
  %v396 = vadd.f32 %v203, %v395
  %v397 = vpop.f32.mrb[0].mxu0
  %398 = vmatprep.mubr.f32.mxu0 0.0
  %399 = vmatmul.mubr.f32.gmra.mrb[0].mxu0 %v281
  %v400 = vpop.f32.mrb[0].mxu0
  %v401 = vadd.f32 %v208, %v400
  %v402 = vpop.f32.mrb[0].mxu0
  %403 = vmatprep.mubr.f32.mxu0 0.0
  %404 = vmatmul.mubr.f32.gmra.mrb[0].mxu0 %v284
  %v405 = vpop.f32.mrb[0].mxu0
  %v406 = vadd.f32 %v213, %v405
  %v407 = vpop.f32.mrb[0].mxu0
  %408 = vmatprep.mubr.f32.mxu0 0.0
  %409 = vmatmul.mubr.f32.gmra.mrb[0].mxu0 %v287
  %v410 = vpop.f32.mrb[0].mxu0
  %v411 = vadd.f32 %v218, %v410
  %v412 = vpop.f32.mrb[0].mxu0
  %413 = vmatprep.mubr.f32.mxu0 0.0
  %414 = vmatmul.mubr.f32.gmra.mrb[0].mxu0 %v290
  %v415 = vpop.f32.mrb[0].mxu0
  %v416 = vadd.f32 %v223, %v415
  %v417 = vpop.f32.mrb[0].mxu0
  %418 = vmatprep.mubr.f32.mxu0 0.0
  %419 = vmatmul.mubr.f32.gmra.mrb[0].mxu0 %v293
  %v420 = vpop.f32.mrb[0].mxu0
  %v421 = vadd.f32 %v228, %v420
  %v422 = vpop.f32.mrb[0].mxu0
  %423 = vmatprep.mubr.f32.mxu0 0.0
  %424 = vmatmul.mubr.f32.gmra.mrb[0].mxu0 %v296
  %v425 = vpop.f32.mrb[0].mxu0
  %v426 = vadd.f32 %v233, %v425
  %v427 = vpop.f32.mrb[0].mxu0
  %428 = vmatprep.mubr.f32.mxu0 0.0
  %429 = vmatmul.mubr.f32.gmra.mrb[0].mxu0 %v299
  %v430 = vpop.f32.mrb[0].mxu0
  %v431 = vadd.f32 %v238, %v430
  %v432 = vpop.f32.mrb[0].mxu0
  %433 = vmatprep.mubr.f32.mxu0 0.0
  %434 = vmatmul.mubr.f32.gmra.mrb[0].mxu0 %v302
  %v435 = vpop.f32.mrb[0].mxu0
  %v436 = vadd.f32 %v243, %v435
  %v437 = vpop.f32.mrb[0].mxu0
  %438 = vmatprep.mubr.f32.mxu0 0.0
  %439 = vmatmul.mubr.f32.gmra.mrb[0].mxu0 %v305
  %v440 = vpop.f32.mrb[0].mxu0
  %v441 = vadd.f32 %v248, %v440
  %v442 = vpop.f32.mrb[0].mxu0
  %443 = vmatprep.mubr.f32.mxu0 0.0
  %444 = vmatmul.mubr.f32.gmra.mrb[0].mxu0 %v308
  %v445 = vpop.f32.mrb[0].mxu0
  %v446 = vadd.f32 %v253, %v445
  %v447 = vpop.f32.mrb[0].mxu0
  %448 = vmatprep.mubr.f32.mxu0 0.0
  %449 = vmatmul.mubr.f32.gmra.mrb[0].mxu0 %v311
  %v450 = vpop.f32.mrb[0].mxu0
  %v451 = vadd.f32 %v258, %v450
  %v452 = vpop.f32.mrb[0].mxu0
  %453 = vmatprep.mubr.f32.mxu0 0.0
  %454 = vmatmul.mubr.f32.gmra.mrb[0].mxu0 %v314
  %v455 = vpop.f32.mrb[0].mxu0
  %v456 = vadd.f32 %v263, %v455
  %v457 = vpop.f32.mrb[0].mxu0
  %458 = vmatprep.mubr.f32.mxu0 0.0
  %459 = vmatmul.mubr.f32.gmra.mrb[0].mxu0 %v317
  %v460 = vpop.f32.mrb[0].mxu0
  %v461 = vadd.f32 %v268, %v460
  %v462 = vpop.f32.mrb[0].mxu0
  %463 = vdwg.mxu0
  %v464 = vld [vmem:[%s6] sm:$0x1]
  %v466 = vlaneseq
  %v467 = vshrl.u32 %v466, 7
  %v468 = vsub.s32 0, %v467
  %v469 = vrot.slane %v464, %v468
  %v471 = vadd.f32 %v386, %v469
  %v472 = vadd.f32 %v391, %v469
  %v473 = vadd.f32 %v396, %v469
  %v474 = vadd.f32 %v401, %v469
  %v475 = vadd.f32 %v406, %v469
  %v476 = vadd.f32 %v411, %v469
  %v477 = vadd.f32 %v416, %v469
  %v478 = vadd.f32 %v421, %v469
  %v479 = vadd.f32 %v426, %v469
  %v480 = vadd.f32 %v431, %v469
  %v481 = vadd.f32 %v436, %v469
  %v482 = vadd.f32 %v441, %v469
  %v483 = vadd.f32 %v446, %v469
  %v484 = vadd.f32 %v451, %v469
  %v485 = vadd.f32 %v456, %v469
  %v486 = vadd.f32 %v461, %v469
  %v487 = vmax.f32 %v471, 0.0
  %v488 = vmax.f32 %v472, 0.0
  %v489 = vmax.f32 %v473, 0.0
  %v490 = vmax.f32 %v474, 0.0
  %v491 = vmax.f32 %v475, 0.0
  %v492 = vmax.f32 %v476, 0.0
  %v493 = vmax.f32 %v477, 0.0
  %v494 = vmax.f32 %v478, 0.0
  %v495 = vmax.f32 %v479, 0.0
  %v496 = vmax.f32 %v480, 0.0
  %v497 = vmax.f32 %v481, 0.0
  %v498 = vmax.f32 %v482, 0.0
  %v499 = vmax.f32 %v483, 0.0
  %v500 = vmax.f32 %v484, 0.0
  %v501 = vmax.f32 %v485, 0.0
  %v502 = vmax.f32 %v486, 0.0
  %v503 = vld [vmem:[%s7] sm:$0xff]
  %v504 = vld [vmem:[%s7 + $0x8] sm:$0xff]
  %v505 = vld [vmem:[%s7 + $0x10] sm:$0xff]
  %v506 = vld [vmem:[%s7 + $0x18] sm:$0xff]
  %v507 = vld [vmem:[%s8] sm:$0x1]
  %v509 = vlaneseq
  %v510 = vshrl.u32 %v509, 7
  %v511 = vsub.s32 0, %v510
  %v512 = vrot.slane %v507, %v511
  %v515 = vsel %vm77, %v487, 0
  %v518 = vsel %vm77, %v488, 0
  %v521 = vsel %vm77, %v489, 0
  %v524 = vsel %vm77, %v490, 0
  %v527 = vsel %vm77, %v491, 0
  %v530 = vsel %vm77, %v492, 0
  %v533 = vsel %vm77, %v493, 0
  %v536 = vsel %vm77, %v494, 0
  %v539 = vsel %vm77, %v495, 0
  %v542 = vsel %vm77, %v496, 0
  %v545 = vsel %vm77, %v497, 0
  %v548 = vsel %vm77, %v498, 0
  %v551 = vsel %vm77, %v499, 0
  %v554 = vsel %vm77, %v500, 0
  %v557 = vsel %vm77, %v501, 0
  %v560 = vsel %vm77, %v502, 0
  %562 = vmatprep.subr.mxu0 0.0
  %563 = vmatpush1.msra.mxu0 %v503
  %564 = vmatprep.subr.mxu0 0.0
  %565 = vmatpush1.msra.mxu0 %v504
  %566 = vmatprep.subr.mxu0 0.0
  %567 = vmatpush1.msra.mxu0 %v505
  %568 = vmatprep.subr.mxu0 0.0
  %569 = vmatpush1.msra.mxu0 %v506
  %570 = vmatprep.subr.mxu0 0.0
  %571 = vmatpush1.msra.mxu0 0.0
  %572 = vmatprep.subr.mxu0 0.0
  %573 = vmatpush1.msra.mxu0 0.0
  %574 = vmatprep.subr.mxu0 0.0
  %575 = vmatpush1.msra.mxu0 0.0
  %576 = vmatprep.subr.mxu0 0.0
  %577 = vmatpush1.msra.mxu0 0.0
  %578 = vmatprep.subr.mxu0 0.0
  %579 = vmatpush1.msra.mxu0 0.0
  %580 = vmatprep.subr.mxu0 0.0
  %581 = vmatpush1.msra.mxu0 0.0
  %582 = vmatprep.subr.mxu0 0.0
  %583 = vmatpush1.msra.mxu0 0.0
  %584 = vmatprep.subr.mxu0 0.0
  %585 = vmatpush1.msra.mxu0 0.0
  %586 = vmatprep.subr.mxu0 0.0
  %587 = vmatpush1.msra.mxu0 0.0
  %588 = vmatprep.subr.mxu0 0.0
  %589 = vmatpush1.msra.mxu0 0.0
  %590 = vmatprep.subr.mxu0 0.0
  %591 = vmatpush1.msra.mxu0 0.0
  %592 = vmatprep.subr.mxu0 0.0
  %593 = vmatpush1.msra.mxu0 0.0
  %594 = vmatprep.subr.mxu0 0.0
  %595 = vmatpush1.msra.mxu0 0.0
  %596 = vmatprep.subr.mxu0 0.0
  %597 = vmatpush1.msra.mxu0 0.0
  %598 = vmatprep.subr.mxu0 0.0
  %599 = vmatpush1.msra.mxu0 0.0
  %600 = vmatprep.subr.mxu0 0.0
  %601 = vmatpush1.msra.mxu0 0.0
  %602 = vmatprep.subr.mxu0 0.0
  %603 = vmatpush1.msra.mxu0 0.0
  %604 = vmatprep.subr.mxu0 0.0
  %605 = vmatpush1.msra.mxu0 0.0
  %606 = vmatprep.subr.mxu0 0.0
  %607 = vmatpush1.msra.mxu0 0.0
  %608 = vmatprep.subr.mxu0 0.0
  %609 = vmatpush1.msra.mxu0 0.0
  %610 = vmatprep.subr.mxu0 0.0
  %611 = vmatpush1.msra.mxu0 0.0
  %612 = vmatprep.subr.mxu0 0.0
  %613 = vmatpush1.msra.mxu0 0.0
  %614 = vmatprep.subr.mxu0 0.0
  %615 = vmatpush1.msra.mxu0 0.0
  %616 = vmatprep.subr.mxu0 0.0
  %617 = vmatpush1.msra.mxu0 0.0
  %618 = vmatprep.subr.mxu0 0.0
  %619 = vmatpush1.msra.mxu0 0.0
  %620 = vmatprep.subr.mxu0 0.0
  %621 = vmatpush1.msra.mxu0 0.0
  %622 = vmatprep.subr.mxu0 0.0
  %623 = vmatpush1.msra.mxu0 0.0
  %624 = vmatprep.subr.mxu0 0.0
  %625 = vmatpush1.msra.mxu0 0.0
  %626 = vmatprep.mubr.f32.mxu0 0.0
  %627 = vmatmul.mubr.f32.gmra.mrb[0].mxu0 %v515
  %v628 = vpop.f32.mrb[0].mxu0
  %v629 = vadd.f32 %v512, %v628
  %v630 = vpop.f32.mrb[0].mxu0
  %631 = vmatprep.mubr.f32.mxu0 0.0
  %632 = vmatmul.mubr.f32.gmra.mrb[0].mxu0 %v518
  %v633 = vpop.f32.mrb[0].mxu0
  %v634 = vadd.f32 %v512, %v633
  %v635 = vpop.f32.mrb[0].mxu0
  %636 = vmatprep.mubr.f32.mxu0 0.0
  %637 = vmatmul.mubr.f32.gmra.mrb[0].mxu0 %v521
  %v638 = vpop.f32.mrb[0].mxu0
  %v639 = vadd.f32 %v512, %v638
  %v640 = vpop.f32.mrb[0].mxu0
  %641 = vmatprep.mubr.f32.mxu0 0.0
  %642 = vmatmul.mubr.f32.gmra.mrb[0].mxu0 %v524
  %v643 = vpop.f32.mrb[0].mxu0
  %v644 = vadd.f32 %v512, %v643
  %v645 = vpop.f32.mrb[0].mxu0
  %646 = vmatprep.mubr.f32.mxu0 0.0
  %647 = vmatmul.mubr.f32.gmra.mrb[0].mxu0 %v527
  %v648 = vpop.f32.mrb[0].mxu0
  %v649 = vadd.f32 %v512, %v648
  %v650 = vpop.f32.mrb[0].mxu0
  %651 = vmatprep.mubr.f32.mxu0 0.0
  %652 = vmatmul.mubr.f32.gmra.mrb[0].mxu0 %v530
  %v653 = vpop.f32.mrb[0].mxu0
  %v654 = vadd.f32 %v512, %v653
  %v655 = vpop.f32.mrb[0].mxu0
  %656 = vmatprep.mubr.f32.mxu0 0.0
  %657 = vmatmul.mubr.f32.gmra.mrb[0].mxu0 %v533
  %v658 = vpop.f32.mrb[0].mxu0
  %v659 = vadd.f32 %v512, %v658
  %v660 = vpop.f32.mrb[0].mxu0
  %661 = vmatprep.mubr.f32.mxu0 0.0
  %662 = vmatmul.mubr.f32.gmra.mrb[0].mxu0 %v536
  %v663 = vpop.f32.mrb[0].mxu0
  %v664 = vadd.f32 %v512, %v663
  %v665 = vpop.f32.mrb[0].mxu0
  %666 = vmatprep.mubr.f32.mxu0 0.0
  %667 = vmatmul.mubr.f32.gmra.mrb[0].mxu0 %v539
  %v668 = vpop.f32.mrb[0].mxu0
  %v669 = vadd.f32 %v512, %v668
  %v670 = vpop.f32.mrb[0].mxu0
  %671 = vmatprep.mubr.f32.mxu0 0.0
  %672 = vmatmul.mubr.f32.gmra.mrb[0].mxu0 %v542
  %v673 = vpop.f32.mrb[0].mxu0
  %v674 = vadd.f32 %v512, %v673
  %v675 = vpop.f32.mrb[0].mxu0
  %676 = vmatprep.mubr.f32.mxu0 0.0
  %677 = vmatmul.mubr.f32.gmra.mrb[0].mxu0 %v545
  %v678 = vpop.f32.mrb[0].mxu0
  %v679 = vadd.f32 %v512, %v678
  %v680 = vpop.f32.mrb[0].mxu0
  %681 = vmatprep.mubr.f32.mxu0 0.0
  %682 = vmatmul.mubr.f32.gmra.mrb[0].mxu0 %v548
  %v683 = vpop.f32.mrb[0].mxu0
  %v684 = vadd.f32 %v512, %v683
  %v685 = vpop.f32.mrb[0].mxu0
  %686 = vmatprep.mubr.f32.mxu0 0.0
  %687 = vmatmul.mubr.f32.gmra.mrb[0].mxu0 %v551
  %v688 = vpop.f32.mrb[0].mxu0
  %v689 = vadd.f32 %v512, %v688
  %v690 = vpop.f32.mrb[0].mxu0
  %691 = vmatprep.mubr.f32.mxu0 0.0
  %692 = vmatmul.mubr.f32.gmra.mrb[0].mxu0 %v554
  %v693 = vpop.f32.mrb[0].mxu0
  %v694 = vadd.f32 %v512, %v693
  %v695 = vpop.f32.mrb[0].mxu0
  %696 = vmatprep.mubr.f32.mxu0 0.0
  %697 = vmatmul.mubr.f32.gmra.mrb[0].mxu0 %v557
  %v698 = vpop.f32.mrb[0].mxu0
  %v699 = vadd.f32 %v512, %v698
  %v700 = vpop.f32.mrb[0].mxu0
  %701 = vmatprep.mubr.f32.mxu0 0.0
  %702 = vmatmul.mubr.f32.gmra.mrb[0].mxu0 %v560
  %v703 = vpop.f32.mrb[0].mxu0
  %v704 = vadd.f32 %v512, %v703
  %v705 = vpop.f32.mrb[0].mxu0
  %706 = vdwg.mxu0
  %v707 = vmax.f32 %v629, 0.0
  %v708 = vmax.f32 %v634, 0.0
  %v709 = vmax.f32 %v639, 0.0
  %v710 = vmax.f32 %v644, 0.0
  %v711 = vmax.f32 %v649, 0.0
  %v712 = vmax.f32 %v654, 0.0
  %v713 = vmax.f32 %v659, 0.0
  %v714 = vmax.f32 %v664, 0.0
  %v715 = vmax.f32 %v669, 0.0
  %v716 = vmax.f32 %v674, 0.0
  %v717 = vmax.f32 %v679, 0.0
  %v718 = vmax.f32 %v684, 0.0
  %v719 = vmax.f32 %v689, 0.0
  %v720 = vmax.f32 %v694, 0.0
  %v721 = vmax.f32 %v699, 0.0
  %v722 = vmax.f32 %v704, 0.0
  %723 = vst.msk [vmem:[%s10] sm:$0xff] %vm77, %v707
  %724 = vst.msk [vmem:[%s10 + $0x8] sm:$0xff] %vm77, %v708
  %725 = vst.msk [vmem:[%s10 + $0x10] sm:$0xff] %vm77, %v709
  %726 = vst.msk [vmem:[%s10 + $0x18] sm:$0xff] %vm77, %v710
  %727 = vst.msk [vmem:[%s10 + $0x20] sm:$0xff] %vm77, %v711
  %728 = vst.msk [vmem:[%s10 + $0x28] sm:$0xff] %vm77, %v712
  %729 = vst.msk [vmem:[%s10 + $0x30] sm:$0xff] %vm77, %v713
  %730 = vst.msk [vmem:[%s10 + $0x38] sm:$0xff] %vm77, %v714
  %731 = vst.msk [vmem:[%s10 + $0x40] sm:$0xff] %vm77, %v715
  %732 = vst.msk [vmem:[%s10 + $0x48] sm:$0xff] %vm77, %v716
  %733 = vst.msk [vmem:[%s10 + $0x50] sm:$0xff] %vm77, %v717
  %734 = vst.msk [vmem:[%s10 + $0x58] sm:$0xff] %vm77, %v718
  %735 = vst.msk [vmem:[%s10 + $0x60] sm:$0xff] %vm77, %v719
  %736 = vst.msk [vmem:[%s10 + $0x68] sm:$0xff] %vm77, %v720
  %737 = vst.msk [vmem:[%s10 + $0x70] sm:$0xff] %vm77, %v721
  %738 = vst.msk [vmem:[%s10 + $0x78] sm:$0xff] %vm77, %v722
  %v739 = vld [vmem:[%s9] sm:$0xff]
  %v740 = vld [vmem:[%s9 + $0x8] sm:$0xff]
  %v741 = vld [vmem:[%s9 + $0x10] sm:$0xff]
  %v742 = vld [vmem:[%s9 + $0x18] sm:$0xff]
  %743 = vmatprep.subr.mxu0 0.0
  %744 = vmatpush1.msra.mxu0 %v739
  %745 = vmatprep.subr.mxu0 0.0
  %746 = vmatpush1.msra.mxu0 %v740
  %747 = vmatprep.subr.mxu0 0.0
  %748 = vmatpush1.msra.mxu0 %v741
  %749 = vmatprep.subr.mxu0 0.0
  %750 = vmatpush1.msra.mxu0 %v742
  %751 = vmatprep.subr.mxu0 0.0
  %752 = vmatpush1.msra.mxu0 0.0
  %753 = vmatprep.subr.mxu0 0.0
  %754 = vmatpush1.msra.mxu0 0.0
  %755 = vmatprep.subr.mxu0 0.0
  %756 = vmatpush1.msra.mxu0 0.0
  %757 = vmatprep.subr.mxu0 0.0
  %758 = vmatpush1.msra.mxu0 0.0
  %759 = vmatprep.subr.mxu0 0.0
  %760 = vmatpush1.msra.mxu0 0.0
  %761 = vmatprep.subr.mxu0 0.0
  %762 = vmatpush1.msra.mxu0 0.0
  %763 = vmatprep.subr.mxu0 0.0
  %764 = vmatpush1.msra.mxu0 0.0
  %765 = vmatprep.subr.mxu0 0.0
  %766 = vmatpush1.msra.mxu0 0.0
  %767 = vmatprep.subr.mxu0 0.0
  %768 = vmatpush1.msra.mxu0 0.0
  %769 = vmatprep.subr.mxu0 0.0
  %770 = vmatpush1.msra.mxu0 0.0
  %771 = vmatprep.subr.mxu0 0.0
  %772 = vmatpush1.msra.mxu0 0.0
  %773 = vmatprep.subr.mxu0 0.0
  %774 = vmatpush1.msra.mxu0 0.0
  %775 = vmatprep.subr.mxu0 0.0
  %776 = vmatpush1.msra.mxu0 0.0
  %777 = vmatprep.subr.mxu0 0.0
  %778 = vmatpush1.msra.mxu0 0.0
  %779 = vmatprep.subr.mxu0 0.0
  %780 = vmatpush1.msra.mxu0 0.0
  %781 = vmatprep.subr.mxu0 0.0
  %782 = vmatpush1.msra.mxu0 0.0
  %783 = vmatprep.subr.mxu0 0.0
  %784 = vmatpush1.msra.mxu0 0.0
  %785 = vmatprep.subr.mxu0 0.0
  %786 = vmatpush1.msra.mxu0 0.0
  %787 = vmatprep.subr.mxu0 0.0
  %788 = vmatpush1.msra.mxu0 0.0
  %789 = vmatprep.subr.mxu0 0.0
  %790 = vmatpush1.msra.mxu0 0.0
  %791 = vmatprep.subr.mxu0 0.0
  %792 = vmatpush1.msra.mxu0 0.0
  %793 = vmatprep.subr.mxu0 0.0
  %794 = vmatpush1.msra.mxu0 0.0
  %795 = vmatprep.subr.mxu0 0.0
  %796 = vmatpush1.msra.mxu0 0.0
  %797 = vmatprep.subr.mxu0 0.0
  %798 = vmatpush1.msra.mxu0 0.0
  %799 = vmatprep.subr.mxu0 0.0
  %800 = vmatpush1.msra.mxu0 0.0
  %801 = vmatprep.subr.mxu0 0.0
  %802 = vmatpush1.msra.mxu0 0.0
  %803 = vmatprep.subr.mxu0 0.0
  %804 = vmatpush1.msra.mxu0 0.0
  %805 = vmatprep.subr.mxu0 0.0
  %806 = vmatpush1.msra.mxu0 0.0
  %807 = vmatprep.mubr.f32.mxu0 0.0
  %808 = vmatmul.mubr.f32.gmra.mrb[0].mxu0 %v272
  %v809 = vpop.f32.mrb[0].mxu0
  %v810 = vadd.f32 0.0, %v809
  %v811 = vpop.f32.mrb[0].mxu0
  %812 = vmatprep.mubr.f32.mxu0 0.0
  %813 = vmatmul.mubr.f32.gmra.mrb[0].mxu0 %v275
  %v814 = vpop.f32.mrb[0].mxu0
  %v815 = vadd.f32 0.0, %v814
  %v816 = vpop.f32.mrb[0].mxu0
  %817 = vmatprep.mubr.f32.mxu0 0.0
  %818 = vmatmul.mubr.f32.gmra.mrb[0].mxu0 %v278
  %v819 = vpop.f32.mrb[0].mxu0
  %v820 = vadd.f32 0.0, %v819
  %v821 = vpop.f32.mrb[0].mxu0
  %822 = vmatprep.mubr.f32.mxu0 0.0
  %823 = vmatmul.mubr.f32.gmra.mrb[0].mxu0 %v281
  %v824 = vpop.f32.mrb[0].mxu0
  %v825 = vadd.f32 0.0, %v824
  %v826 = vpop.f32.mrb[0].mxu0
  %827 = vmatprep.mubr.f32.mxu0 0.0
  %828 = vmatmul.mubr.f32.gmra.mrb[0].mxu0 %v284
  %v829 = vpop.f32.mrb[0].mxu0
  %v830 = vadd.f32 0.0, %v829
  %v831 = vpop.f32.mrb[0].mxu0
  %832 = vmatprep.mubr.f32.mxu0 0.0
  %833 = vmatmul.mubr.f32.gmra.mrb[0].mxu0 %v287
  %v834 = vpop.f32.mrb[0].mxu0
  %v835 = vadd.f32 0.0, %v834
  %v836 = vpop.f32.mrb[0].mxu0
  %837 = vmatprep.mubr.f32.mxu0 0.0
  %838 = vmatmul.mubr.f32.gmra.mrb[0].mxu0 %v290
  %v839 = vpop.f32.mrb[0].mxu0
  %v840 = vadd.f32 0.0, %v839
  %v841 = vpop.f32.mrb[0].mxu0
  %842 = vmatprep.mubr.f32.mxu0 0.0
  %843 = vmatmul.mubr.f32.gmra.mrb[0].mxu0 %v293
  %v844 = vpop.f32.mrb[0].mxu0
  %v845 = vadd.f32 0.0, %v844
  %v846 = vpop.f32.mrb[0].mxu0
  %847 = vmatprep.mubr.f32.mxu0 0.0
  %848 = vmatmul.mubr.f32.gmra.mrb[0].mxu0 %v296
  %v849 = vpop.f32.mrb[0].mxu0
  %v850 = vadd.f32 0.0, %v849
  %v851 = vpop.f32.mrb[0].mxu0
  %852 = vmatprep.mubr.f32.mxu0 0.0
  %853 = vmatmul.mubr.f32.gmra.mrb[0].mxu0 %v299
  %v854 = vpop.f32.mrb[0].mxu0
  %v855 = vadd.f32 0.0, %v854
  %v856 = vpop.f32.mrb[0].mxu0
  %857 = vmatprep.mubr.f32.mxu0 0.0
  %858 = vmatmul.mubr.f32.gmra.mrb[0].mxu0 %v302
  %v859 = vpop.f32.mrb[0].mxu0
  %v860 = vadd.f32 0.0, %v859
  %v861 = vpop.f32.mrb[0].mxu0
  %862 = vmatprep.mubr.f32.mxu0 0.0
  %863 = vmatmul.mubr.f32.gmra.mrb[0].mxu0 %v305
  %v864 = vpop.f32.mrb[0].mxu0
  %v865 = vadd.f32 0.0, %v864
  %v866 = vpop.f32.mrb[0].mxu0
  %867 = vmatprep.mubr.f32.mxu0 0.0
  %868 = vmatmul.mubr.f32.gmra.mrb[0].mxu0 %v308
  %v869 = vpop.f32.mrb[0].mxu0
  %v870 = vadd.f32 0.0, %v869
  %v871 = vpop.f32.mrb[0].mxu0
  %872 = vmatprep.mubr.f32.mxu0 0.0
  %873 = vmatmul.mubr.f32.gmra.mrb[0].mxu0 %v311
  %v874 = vpop.f32.mrb[0].mxu0
  %v875 = vadd.f32 0.0, %v874
  %v876 = vpop.f32.mrb[0].mxu0
  %877 = vmatprep.mubr.f32.mxu0 0.0
  %878 = vmatmul.mubr.f32.gmra.mrb[0].mxu0 %v314
  %v879 = vpop.f32.mrb[0].mxu0
  %v880 = vadd.f32 0.0, %v879
  %v881 = vpop.f32.mrb[0].mxu0
  %882 = vmatprep.mubr.f32.mxu0 0.0
  %883 = vmatmul.mubr.f32.gmra.mrb[0].mxu0 %v317
  %v884 = vpop.f32.mrb[0].mxu0
  %v885 = vadd.f32 0.0, %v884
  %v886 = vpop.f32.mrb[0].mxu0
  %887 = vdwg.mxu0
  %v888 = vmul.f32 %v810, %v53
  %v889 = vmul.f32 %v815, %v54
  %v890 = vmul.f32 %v820, %v55
  %v891 = vmul.f32 %v825, %v56
  %v892 = vmul.f32 %v830, %v57
  %v893 = vmul.f32 %v835, %v58
  %v894 = vmul.f32 %v840, %v59
  %v895 = vmul.f32 %v845, %v60
  %v896 = vmul.f32 %v850, %v61
  %v897 = vmul.f32 %v855, %v62
  %v898 = vmul.f32 %v860, %v63
  %v899 = vmul.f32 %v865, %v64
  %v900 = vmul.f32 %v870, %v65
  %v901 = vmul.f32 %v875, %v66
  %v902 = vmul.f32 %v880, %v67
  %v903 = vmul.f32 %v885, %v68
  %v904 = vsel %vm77, %v888, 0.0
  %905 = vadd.xlane.f32.xlu0 %v904
  %v906 = vpop.xlane.xlu0 %905
  %v907 = vsel %vm77, %v889, 0.0
  %908 = vadd.xlane.f32.xlu0 %v907
  %v909 = vpop.xlane.xlu0 %908
  %v910 = vsel %vm77, %v890, 0.0
  %911 = vadd.xlane.f32.xlu0 %v910
  %v912 = vpop.xlane.xlu0 %911
  %v913 = vsel %vm77, %v891, 0.0
  %914 = vadd.xlane.f32.xlu0 %v913
  %v915 = vpop.xlane.xlu0 %914
  %v916 = vsel %vm77, %v892, 0.0
  %917 = vadd.xlane.f32.xlu0 %v916
  %v918 = vpop.xlane.xlu0 %917
  %v919 = vsel %vm77, %v893, 0.0
  %920 = vadd.xlane.f32.xlu0 %v919
  %v921 = vpop.xlane.xlu0 %920
  %v922 = vsel %vm77, %v894, 0.0
  %923 = vadd.xlane.f32.xlu0 %v922
  %v924 = vpop.xlane.xlu0 %923
  %v925 = vsel %vm77, %v895, 0.0
  %926 = vadd.xlane.f32.xlu0 %v925
  %v927 = vpop.xlane.xlu0 %926
  %v928 = vsel %vm77, %v896, 0.0
  %929 = vadd.xlane.f32.xlu0 %v928
  %v930 = vpop.xlane.xlu0 %929
  %v931 = vsel %vm77, %v897, 0.0
  %932 = vadd.xlane.f32.xlu0 %v931
  %v933 = vpop.xlane.xlu0 %932
  %v934 = vsel %vm77, %v898, 0.0
  %935 = vadd.xlane.f32.xlu0 %v934
  %v936 = vpop.xlane.xlu0 %935
  %v937 = vsel %vm77, %v899, 0.0
  %938 = vadd.xlane.f32.xlu0 %v937
  %v939 = vpop.xlane.xlu0 %938
  %v940 = vsel %vm77, %v900, 0.0
  %941 = vadd.xlane.f32.xlu0 %v940
  %v942 = vpop.xlane.xlu0 %941
  %v943 = vsel %vm77, %v901, 0.0
  %944 = vadd.xlane.f32.xlu0 %v943
  %v945 = vpop.xlane.xlu0 %944
  %v946 = vsel %vm77, %v902, 0.0
  %947 = vadd.xlane.f32.xlu0 %v946
  %v948 = vpop.xlane.xlu0 %947
  %v949 = vsel %vm77, %v903, 0.0
  %950 = vadd.xlane.f32.xlu0 %v949
  %v951 = vpop.xlane.xlu0 %950
  %v952 = vld [vmem:[%s2] sm:$0xff]
  %v953 = vld [vmem:[%s2 + $0x8] sm:$0xff]
  %v954 = vld [vmem:[%s2 + $0x10] sm:$0xff]
  %v955 = vld [vmem:[%s2 + $0x18] sm:$0xff]
  %v956 = vld [vmem:[%s2 + $0x20] sm:$0xff]
  %v957 = vld [vmem:[%s2 + $0x28] sm:$0xff]
  %v958 = vld [vmem:[%s2 + $0x30] sm:$0xff]
  %v959 = vld [vmem:[%s2 + $0x38] sm:$0xff]
  %v960 = vld [vmem:[%s2 + $0x40] sm:$0xff]
  %v961 = vld [vmem:[%s2 + $0x48] sm:$0xff]
  %v962 = vld [vmem:[%s2 + $0x50] sm:$0xff]
  %v963 = vld [vmem:[%s2 + $0x58] sm:$0xff]
  %v964 = vld [vmem:[%s2 + $0x60] sm:$0xff]
  %v965 = vld [vmem:[%s2 + $0x68] sm:$0xff]
  %v966 = vld [vmem:[%s2 + $0x70] sm:$0xff]
  %v967 = vld [vmem:[%s2 + $0x78] sm:$0xff]
  %v968 = vadd.f32 %v906, %v952
  %v969 = vadd.f32 %v909, %v953
  %v970 = vadd.f32 %v912, %v954
  %v971 = vadd.f32 %v915, %v955
  %v972 = vadd.f32 %v918, %v956
  %v973 = vadd.f32 %v921, %v957
  %v974 = vadd.f32 %v924, %v958
  %v975 = vadd.f32 %v927, %v959
  %v976 = vadd.f32 %v930, %v960
  %v977 = vadd.f32 %v933, %v961
  %v978 = vadd.f32 %v936, %v962
  %v979 = vadd.f32 %v939, %v963
  %v980 = vadd.f32 %v942, %v964
  %v981 = vadd.f32 %v945, %v965
  %v982 = vadd.f32 %v948, %v966
  %v983 = vadd.f32 %v951, %v967
  %v984 = vld [vmem:[%s3] sm:$0xff]
  %v985 = vld [vmem:[%s3 + $0x8] sm:$0xff]
  %v986 = vld [vmem:[%s3 + $0x10] sm:$0xff]
  %v987 = vld [vmem:[%s3 + $0x18] sm:$0xff]
  %v988 = vld [vmem:[%s3 + $0x20] sm:$0xff]
  %v989 = vld [vmem:[%s3 + $0x28] sm:$0xff]
  %v990 = vld [vmem:[%s3 + $0x30] sm:$0xff]
  %v991 = vld [vmem:[%s3 + $0x38] sm:$0xff]
  %v992 = vld [vmem:[%s3 + $0x40] sm:$0xff]
  %v993 = vld [vmem:[%s3 + $0x48] sm:$0xff]
  %v994 = vld [vmem:[%s3 + $0x50] sm:$0xff]
  %v995 = vld [vmem:[%s3 + $0x58] sm:$0xff]
  %v996 = vld [vmem:[%s3 + $0x60] sm:$0xff]
  %v997 = vld [vmem:[%s3 + $0x68] sm:$0xff]
  %v998 = vld [vmem:[%s3 + $0x70] sm:$0xff]
  %v999 = vld [vmem:[%s3 + $0x78] sm:$0xff]
  %v1000 = vadd.f32 %v968, %v984
  %v1001 = vadd.f32 %v969, %v985
  %v1002 = vadd.f32 %v970, %v986
  %v1003 = vadd.f32 %v971, %v987
  %v1004 = vadd.f32 %v972, %v988
  %v1005 = vadd.f32 %v973, %v989
  %v1006 = vadd.f32 %v974, %v990
  %v1007 = vadd.f32 %v975, %v991
  %v1008 = vadd.f32 %v976, %v992
  %v1009 = vadd.f32 %v977, %v993
  %v1010 = vadd.f32 %v978, %v994
  %v1011 = vadd.f32 %v979, %v995
  %v1012 = vadd.f32 %v980, %v996
  %v1013 = vadd.f32 %v981, %v997
  %v1014 = vadd.f32 %v982, %v998
  %v1015 = vadd.f32 %v983, %v999
  %vm1016 = vcmask 7168
  %1017 = vst.msk [vmem:[%s11] sm:$0xff] %vm1016, %v1000
  %1018 = vst.msk [vmem:[%s11 + $0x8] sm:$0xff] %vm1016, %v1001
  %1019 = vst.msk [vmem:[%s11 + $0x10] sm:$0xff] %vm1016, %v1002
  %1020 = vst.msk [vmem:[%s11 + $0x18] sm:$0xff] %vm1016, %v1003
  %1021 = vst.msk [vmem:[%s11 + $0x20] sm:$0xff] %vm1016, %v1004
  %1022 = vst.msk [vmem:[%s11 + $0x28] sm:$0xff] %vm1016, %v1005
  %1023 = vst.msk [vmem:[%s11 + $0x30] sm:$0xff] %vm1016, %v1006
  %1024 = vst.msk [vmem:[%s11 + $0x38] sm:$0xff] %vm1016, %v1007
  %1025 = vst.msk [vmem:[%s11 + $0x40] sm:$0xff] %vm1016, %v1008
  %1026 = vst.msk [vmem:[%s11 + $0x48] sm:$0xff] %vm1016, %v1009
  %1027 = vst.msk [vmem:[%s11 + $0x50] sm:$0xff] %vm1016, %v1010
  %1028 = vst.msk [vmem:[%s11 + $0x58] sm:$0xff] %vm1016, %v1011
  %1029 = vst.msk [vmem:[%s11 + $0x60] sm:$0xff] %vm1016, %v1012
  %1030 = vst.msk [vmem:[%s11 + $0x68] sm:$0xff] %vm1016, %v1013
  %1031 = vst.msk [vmem:[%s11 + $0x70] sm:$0xff] %vm1016, %v1014
  %1032 = vst.msk [vmem:[%s11 + $0x78] sm:$0xff] %vm1016, %v1015
  // Predicated region
  $region42: #{diora_forward.16} parent=0 // pred_check
    _
  $region43: #{diora_forward.16} parent=0 // pred_check_branch
    %1034 = sbr.rel (0) target = $region45
  $region44: #{diora_forward.16} parent=0 // pred_region
    _
  $region45: #{diora_forward.16} parent=0 // pred_fallthru
    _
  // Predicated region
  $region46: #{diora_forward.16} parent=0 // pred_check
    _
  $region47: #{diora_forward.16} parent=0 // pred_check_branch
    %1036 = sbr.rel (0) target = $region49
  $region48: #{diora_forward.16} parent=0 // pred_region
    _
  $region49: #{diora_forward.16} parent=0 // pred_fallthru
    _
  // Predicated region
  $region50: #{diora_forward.16} parent=0 // pred_check
    _
  $region51: #{diora_forward.16} parent=0 // pred_check_branch
    %1038 = sbr.rel (0) target = $region53
  $region52: #{diora_forward.16} parent=0 // pred_region
    _
  $region53: #{diora_forward.16} parent=0 // pred_fallthru
    _
  // Predicated region
  $region54: #{diora_forward.16} parent=0 // pred_check
    _
  $region55: #{diora_forward.16} parent=0 // pred_check_branch
    %1040 = sbr.rel (0) target = $region57
  $region56: #{diora_forward.16} parent=0 // pred_region
    _
  $region57: #{diora_forward.16} parent=0 // pred_fallthru
    _

</llo_original>
